<compile_context>
chip_gen: v7x
topology: tpu7x:2x2x1
jax: 0.10.0
libtpu: 0.0.40
codegen_flags: <defaults>
</compile_context>

<pallas_src>
import functools
import math

import jax
import jax.numpy as jnp
import numpy as np
from jax.experimental import pallas as pl
from jax.experimental.pallas import tpu as pltpu


def encoder_block_kernel(valid_ref,           # (B,) int32   SMEM (scalar prefetch)
                         x_ref,               # (Bt, S, H)   f32
                         wqkv_ref, bqkv_ref,  # (3nh, H, d)  bf16, (3nh, 1, d) f32
                         wo_ref, bo_ref,      # (nh, d, H)   bf16, (1, H) f32
                         g1_ref, be1_ref,     # (1, H) f32
                         w1_ref, b1_ref,      # (H, F) bf16, (1, F) f32
                         w2_ref, b2_ref,      # (F, H) bf16, (1, H) f32
                         g2_ref, be2_ref,     # (1, H) f32
                         out_ref,             # (Bt, S, H)   f32
                         *, num_head):
    Bt, S, H = x_ref.shape
    nh = num_head
    d = H // nh
    N = Bt * S
    f32 = jnp.float32
    cdt = wqkv_ref.dtype          # MXU input dtype (bf16); accumulation is f32

    x = x_ref[...].reshape(N, H)                          # (N, H) f32
    xc = x.astype(cdt)

    # ---- head-batched QKV projection (no lane-granular head split) ----
    # Weights are (3*nh, H, d) host-side; 1/sqrt(d) is already folded into the
    # Q slabs. The split/merge permutations live entirely in the weights.
    xb = jnp.broadcast_to(xc[None], (3 * nh, N, H))
    qkv = jnp.einsum('bnh,bhd->bnd', xb, wqkv_ref[...],
                     preferred_element_type=f32) + bqkv_ref[...]   # (3nh, N, d) f32

    def to_batch(t):                                      # (nh, Bt*S, d) -> (nh*Bt, S, d)
        return t.reshape(nh * Bt, S, d)

    q = to_batch(qkv[0:nh])
    k = to_batch(qkv[nh:2 * nh])
    v = to_batch(qkv[2 * nh:3 * nh])

    # ---- masked dot-product attention, batched over (head, batch) ----
    s = jnp.einsum('bqd,bkd->bqk', q.astype(cdt), k.astype(cdt),
                   preferred_element_type=f32)            # (nh*Bt, S, S) f32

    # valid lens come from SMEM scalars; the mask is only (nh*Bt, 1, S) and is
    # broadcast over query rows by jnp.minimum.  Masked scores become exactly
    # -1e6, matching the reference prepare_softmax fill.
    b0 = pl.program_id(0) * Bt
    valid_bt = jnp.concatenate(
        [jnp.full((1, 1, 1), valid_ref[b0 + i], jnp.int32) for i in range(Bt)],
        axis=0)                                                     # (Bt, 1, 1)
    valid_full = jnp.broadcast_to(valid_bt[None], (nh, Bt, 1, 1)).reshape(nh * Bt, 1, 1)
    col = jax.lax.broadcasted_iota(jnp.int32, (nh * Bt, 1, S), 2)
    bound = jnp.where(col < valid_full, 1e30, -1000000.0)           # (nh*Bt, 1, S) f32
    s = jnp.minimum(s, bound)

    m = jnp.max(s, axis=-1, keepdims=True)
    e = jnp.exp(s - m)
    p = e * pl.reciprocal(jnp.sum(e, axis=-1, keepdims=True), approx=True)

    ctx = jnp.einsum('bqk,bkd->bqd', p.astype(cdt), v.astype(cdt),
                     preferred_element_type=f32)          # (nh*Bt, S, d) f32

    # ---- output projection: head-batched matmul + leading-axis sum ----
    # (replaces the lane-concat head merge; per-head partials just add)
    ctx = ctx.reshape(nh, N, d)
    y1h = jnp.einsum('hnd,hdk->hnk', ctx.astype(cdt), wo_ref[...],
                     preferred_element_type=f32)          # (nh, N, H)
    y1 = jnp.sum(y1h, axis=0) + bo_ref[...]               # (N, H)

    # ---- AddNorm 1 (dropout = identity) ----
    z1 = y1 + x
    mu1 = jnp.mean(z1, axis=-1, keepdims=True)
    var1 = jnp.mean((z1 - mu1) ** 2, axis=-1, keepdims=True)
    y2 = (z1 - mu1) * jax.lax.rsqrt(var1 + 1e-5) * g1_ref[...] + be1_ref[...]

    # ---- Position-wise FFN ----
    h1 = jnp.maximum(
        jnp.dot(y2.astype(cdt), w1_ref[...], preferred_element_type=f32) + b1_ref[...],
        0.0)
    y3 = jnp.dot(h1.astype(cdt), w2_ref[...],
                 preferred_element_type=f32) + b2_ref[...]

    # ---- AddNorm 2 ----
    z2 = y3 + y2
    mu2 = jnp.mean(z2, axis=-1, keepdims=True)
    var2 = jnp.mean((z2 - mu2) ** 2, axis=-1, keepdims=True)
    y4 = (z2 - mu2) * jax.lax.rsqrt(var2 + 1e-5) * g2_ref[...] + be2_ref[...]

    out_ref[...] = y4.reshape(Bt, S, H)


def _pick_block_b(B, S, H, F, num_head, *, mxu_rows=256, act_budget_bytes=24 << 20):
    """Fold batches so block_b*S approaches the 256-row MXU (v6e/v7x), while
    keeping (a) at least 2 grid steps so v7x's second TensorCore gets work and
    (b) the per-step activation footprint inside a VMEM budget."""
    def act_bytes(bb):
        N = bb * S
        scores = 3 * num_head * bb * S * S * 4            # s / e / p (f32)
        proj = (3 * num_head + 8) * N * H * 4             # qkv, broadcast x, slabs
        ffn = 2 * N * F * 4                               # FFN hidden
        return scores + proj + ffn

    best = 1
    for cand in range(1, B + 1):
        if B % cand != 0:
            continue
        if B >= 2 and B // cand < 2:      # keep the "parallel" grid >= 2 long
            continue
        if act_bytes(cand) > act_budget_bytes:
            continue
        best = cand
        if cand * S >= mxu_rows:
            break
    return best


def _vmem_limit_bytes(block_b, S, H, F, num_head):
    """Scoped-VMEM request sized from the actual buffers, with 2x margin,
    clamped to a range that is valid on v5e / v6e / v7x."""
    d = H // num_head
    dpad = max(d, 128)                                   # lane padding of d-wide tiles
    N = block_b * S
    weights = 2 * (3 * num_head * H * dpad + num_head * d * H + 2 * H * F)  # bf16, 1-buffered
    small = 4 * 8 * max(H, F) * 8                        # biases / LN params (padded)
    io = 2 * 2 * block_b * S * H * 4                     # x + out, double-buffered
    act = (3 * num_head * N * H * 2                      # broadcast x (bf16)
           + 4 * num_head * N * dpad * 4                 # qkv + ctx
           + 3 * num_head * block_b * S * S * 4          # s / e / p
           + num_head * N * H * 4                        # per-head y1
           + 6 * N * H * 4                               # y1/z1/y2/z2/y3/y4 slabs
           + 2 * N * F * 4)                              # FFN hidden
    est = weights + small + io + act
    return int(min(96 << 20, max(32 << 20, 2 * est)))


def encoder_block(x, valid_lens, params, num_head, *, block_b=None):
    B, S, H = x.shape
    F = params["w1"].shape[1]
    assert H % num_head == 0
    nh = num_head
    d = H // nh
    if block_b is None:
        block_b = _pick_block_b(B, S, H, F, nh)
    assert B % block_b == 0

    valid1d = valid_lens.astype(jnp.int32).reshape(B)

    # ---- host-side weight preparation ----
    scale = 1.0 / math.sqrt(d)
    # Fold the 1/sqrt(d) attention scale into the Q projection (weights + bias).
    wq = (params["wq"].astype(jnp.float32) * scale).astype(params["wq"].dtype)
    bq = params["bq"] * scale

    def heads_w(w):      # (H, H) -> (nh, H, d); head h = columns [h*d:(h+1)*d]
        return jnp.transpose(w.reshape(H, nh, d), (1, 0, 2))

    def heads_b(b):      # (1, H) -> (nh, 1, d)
        return jnp.transpose(b.reshape(1, nh, d), (1, 0, 2))

    wqkv = jnp.concatenate(
        [heads_w(wq), heads_w(params["wk"]), heads_w(params["wv"])], axis=0)   # (3nh, H, d)
    bqkv = jnp.concatenate(
        [heads_b(bq), heads_b(params["bk"]), heads_b(params["bv"])], axis=0)   # (3nh, 1, d)
    wo_h = params["wo"].reshape(nh, d, H)                                      # (nh, d, H)

    # ---- BlockSpecs ----
    def rep_spec(shape):
        # Grid-invariant operand: constant index map + single buffer
        # (default double-buffering would just waste VMEM on weights).
        zeros = (0,) * len(shape)
        return pl.BlockSpec(shape, lambda b, v: zeros,
                            pipeline_mode=pl.Buffered(1))

    xio_spec = pl.BlockSpec((block_b, S, H), lambda b, v: (b, 0, 0))

    in_specs = [
        xio_spec,
        rep_spec((3 * nh, H, d)), rep_spec((3 * nh, 1, d)),   # wqkv, bqkv
        rep_spec((nh, d, H)), rep_spec((1, H)),               # wo, bo
        rep_spec((1, H)), rep_spec((1, H)),                   # ln1 gamma, beta
        rep_spec((H, F)), rep_spec((1, F)),                   # w1, b1
        rep_spec((F, H)), rep_spec((1, H)),                   # w2, b2
        rep_spec((1, H)), rep_spec((1, H)),                   # ln2 gamma, beta
    ]

    grid_spec = pltpu.PrefetchScalarGridSpec(
        num_scalar_prefetch=1,                 # valid_lens -> SMEM scalars
        grid=(B // block_b,),
        in_specs=in_specs,
        out_specs=xio_spec,
    )

    kernel = functools.partial(encoder_block_kernel, num_head=num_head)
    return pl.pallas_call(
        kernel,
        out_shape=jax.ShapeDtypeStruct((B, S, H), jnp.float32),
        grid_spec=grid_spec,
        compiler_params=pltpu.CompilerParams(
            dimension_semantics=("parallel",),            # batch blocks independent
            vmem_limit_bytes=_vmem_limit_bytes(block_b, S, H, F, nh)),
    )(valid1d, x,
      wqkv, bqkv, wo_h, params["bo"],
      params["g1"], params["be1"],
      params["w1"], params["b1"], params["w2"], params["b2"],
      params["g2"], params["be2"])


def reference(x, valid_lens, p, num_head):
    """Pure-JAX reference mirroring the PyTorch forward (dropout = identity)."""
    f32 = jnp.float32
    B, S, H = x.shape
    d = H // num_head
    wq, wk, wv, wo = (p[n].astype(f32) for n in ("wq", "wk", "wv", "wo"))
    w1, w2 = p["w1"].astype(f32), p["w2"].astype(f32)

    q = x @ wq + p["bq"]
    k = x @ wk + p["bk"]
    v = x @ wv + p["bv"]

    def split(t):
        return t.reshape(B, S, num_head, d).transpose(0, 2, 1, 3)

    qh, kh, vh = split(q), split(k), split(v)
    s = jnp.einsum("bhqd,bhkd->bhqk", qh, kh) / math.sqrt(d)
    keep = jnp.arange(S)[None, :] < valid_lens[:, None]
    s = jnp.where(keep[:, None, None, :], s, -1000000.0)
    pr = jax.nn.softmax(s, axis=-1)
    o = jnp.einsum("bhqk,bhkd->bhqd", pr, vh).transpose(0, 2, 1, 3).reshape(B, S, H)
    y1 = o @ wo + p["bo"]

    def ln(z, g, b):
        m = z.mean(-1, keepdims=True)
        var = ((z - m) ** 2).mean(-1, keepdims=True)
        return (z - m) / jnp.sqrt(var + 1e-5) * g + b

    y2 = ln(y1 + x, p["g1"], p["be1"])
    y3 = jnp.maximum(y2 @ w1 + p["b1"], 0.0) @ w2 + p["b2"]
    return ln(y3 + y2, p["g2"], p["be2"])


def init_params(key, hidden, ffn_hidden, *, weight_dtype=jnp.bfloat16):
    ks = jax.random.split(key, 8)
    scale = 0.1
    wdt = weight_dtype
    p = {
        # matmul weights stored in bf16 (full-rate MXU, half the DMA bytes)
        "wq": (scale * jax.random.normal(ks[0], (hidden, hidden), jnp.float32)).astype(wdt),
        "wk": (scale * jax.random.normal(ks[1], (hidden, hidden), jnp.float32)).astype(wdt),
        "wv": (scale * jax.random.normal(ks[2], (hidden, hidden), jnp.float32)).astype(wdt),
        "wo": (scale * jax.random.normal(ks[3], (hidden, hidden), jnp.float32)).astype(wdt),
        "w1": (scale * jax.random.normal(ks[6], (hidden, ffn_hidden), jnp.float32)).astype(wdt),
        "w2": (scale * jax.random.normal(ks[7], (ffn_hidden, hidden), jnp.float32)).astype(wdt),
        # biases / LayerNorm params stay f32 (added after f32 accumulation)
        "bq": scale * jax.random.normal(ks[4], (1, hidden), jnp.float32),
        "bk": jnp.zeros((1, hidden), jnp.float32),
        "bv": scale * jax.random.normal(ks[5], (1, hidden), jnp.float32),
        "bo": jnp.zeros((1, hidden), jnp.float32),
        "b1": jnp.zeros((1, ffn_hidden), jnp.float32),
        "b2": jnp.zeros((1, hidden), jnp.float32),
        "g1": jnp.ones((1, hidden), jnp.float32),
        "be1": jnp.zeros((1, hidden), jnp.float32),
        "g2": jnp.ones((1, hidden), jnp.float32),
        "be2": jnp.zeros((1, hidden), jnp.float32),
    }
    return p


if __name__ == "__main__":
    B, S, H = 2, 8, 32
    num_head = 4
    ffn_hidden = 64

    key = jax.random.PRNGKey(0)
    kx, kp = jax.random.split(key)
    x = jax.random.normal(kx, (B, S, H), jnp.float32)
    valid_lens = jnp.array([5, 7], dtype=jnp.int32)
    params = init_params(kp, H, ffn_hidden)

    out = encoder_block(x, valid_lens, params, num_head)
    out = jax.block_until_ready(out)

    ref = reference(x, valid_lens, params, num_head)
    # bf16 matmul inputs + approx softmax reciprocal => looser tolerance than pure f32
    np.testing.assert_allclose(np.asarray(out), np.asarray(ref), rtol=3e-2, atol=3e-2)

    print("KERNEL_OK")
</pallas_src>

<mosaic_0001>
module attributes {stable_mosaic.version = 11 : i64} {
  func.func @encoder_block_kernel(%arg0: i32, %arg1: memref<2xi32, #tpu.memory_space<smem>>, %arg2: memref<1x8x32xf32, #tpu.memory_space<vmem>>, %arg3: memref<12x32x8xbf16, #tpu.memory_space<vmem>>, %arg4: memref<12x1x8xf32, #tpu.memory_space<vmem>>, %arg5: memref<4x8x32xbf16, #tpu.memory_space<vmem>>, %arg6: memref<1x32xf32, #tpu.memory_space<vmem>>, %arg7: memref<1x32xf32, #tpu.memory_space<vmem>>, %arg8: memref<1x32xf32, #tpu.memory_space<vmem>>, %arg9: memref<32x64xbf16, #tpu.memory_space<vmem>>, %arg10: memref<1x64xf32, #tpu.memory_space<vmem>>, %arg11: memref<64x32xbf16, #tpu.memory_space<vmem>>, %arg12: memref<1x32xf32, #tpu.memory_space<vmem>>, %arg13: memref<1x32xf32, #tpu.memory_space<vmem>>, %arg14: memref<1x32xf32, #tpu.memory_space<vmem>>, %arg15: memref<1x8x32xf32, #tpu.memory_space<vmem>>) attributes {dimension_semantics = [#tpu.dimension_semantics<parallel>], iteration_bounds = array<i64: 2>, scalar_prefetch = 1 : i64, scratch_operands = 0 : i64, tpu.core_type = #tpu.core_type<tc>, window_params = [{transform_indices = @transform_0, window_bounds = array<i64: 1, 8, 32>}, {pipeline_mode = #tpu.pipeline_mode<synchronous>, transform_indices = @transform_1, window_bounds = array<i64: 12, 32, 8>}, {pipeline_mode = #tpu.pipeline_mode<synchronous>, transform_indices = @transform_2, window_bounds = array<i64: 12, 1, 8>}, {pipeline_mode = #tpu.pipeline_mode<synchronous>, transform_indices = @transform_3, window_bounds = array<i64: 4, 8, 32>}, {pipeline_mode = #tpu.pipeline_mode<synchronous>, transform_indices = @transform_4, window_bounds = array<i64: 1, 32>}, {pipeline_mode = #tpu.pipeline_mode<synchronous>, transform_indices = @transform_5, window_bounds = array<i64: 1, 32>}, {pipeline_mode = #tpu.pipeline_mode<synchronous>, transform_indices = @transform_6, window_bounds = array<i64: 1, 32>}, {pipeline_mode = #tpu.pipeline_mode<synchronous>, transform_indices = @transform_7, window_bounds = array<i64: 32, 64>}, {pipeline_mode = #tpu.pipeline_mode<synchronous>, transform_indices = @transform_8, window_bounds = array<i64: 1, 64>}, {pipeline_mode = #tpu.pipeline_mode<synchronous>, transform_indices = @transform_9, window_bounds = array<i64: 64, 32>}, {pipeline_mode = #tpu.pipeline_mode<synchronous>, transform_indices = @transform_10, window_bounds = array<i64: 1, 32>}, {pipeline_mode = #tpu.pipeline_mode<synchronous>, transform_indices = @transform_11, window_bounds = array<i64: 1, 32>}, {pipeline_mode = #tpu.pipeline_mode<synchronous>, transform_indices = @transform_12, window_bounds = array<i64: 1, 32>}, {transform_indices = @transform_13, window_bounds = array<i64: 1, 8, 32>}]} {
    %c0 = arith.constant 0 : index
    %c0_0 = arith.constant 0 : index
    %c0_1 = arith.constant 0 : index
    %0 = vector.load %arg2[%c0, %c0_0, %c0_1] : memref<1x8x32xf32, #tpu.memory_space<vmem>>, vector<1x8x32xf32>
    %1 = vector.shape_cast %0 : vector<1x8x32xf32> to vector<8x32xf32>
    %2 = arith.truncf %1 : vector<8x32xf32> to vector<8x32xbf16>
    %3 = vector.shape_cast %2 : vector<8x32xbf16> to vector<1x8x32xbf16>
    %4 = vector.shape_cast %3 : vector<1x8x32xbf16> to vector<1x8x32xbf16>
    %5 = vector.broadcast %4 : vector<1x8x32xbf16> to vector<12x8x32xbf16>
    %c0_2 = arith.constant 0 : index
    %c0_3 = arith.constant 0 : index
    %c0_4 = arith.constant 0 : index
    %6 = vector.load %arg3[%c0_2, %c0_3, %c0_4] : memref<12x32x8xbf16, #tpu.memory_space<vmem>>, vector<12x32x8xbf16>
    "tpu.trace_start"() <{level = 10 : i32, message = "bnh,bhd->bnd"}> : () -> ()
    %cst = arith.constant dense<0.000000e+00> : vector<12x8x8xf32>
    %7 = tpu.matmul %5, %6, %cst {dimension_numbers = #tpu.dot_dimension_numbers<[2], [1], [1], [2], [0, 0, 0, 1, 1, 2], [0], [0]>} : vector<12x8x32xbf16>, vector<12x32x8xbf16>, vector<12x8x8xf32> -> vector<12x8x8xf32>
    "tpu.trace_stop"() : () -> ()
    %c0_5 = arith.constant 0 : index
    %c0_6 = arith.constant 0 : index
    %c0_7 = arith.constant 0 : index
    %8 = vector.load %arg4[%c0_5, %c0_6, %c0_7] : memref<12x1x8xf32, #tpu.memory_space<vmem>>, vector<12x1x8xf32>
    %9 = vector.broadcast %8 : vector<12x1x8xf32> to vector<12x8x8xf32>
    %10 = arith.addf %7, %9 : vector<12x8x8xf32>
    %11 = vector.extract_strided_slice %10 {offsets = [0, 0, 0], sizes = [4, 8, 8], strides = [1, 1, 1]} : vector<12x8x8xf32> to vector<4x8x8xf32>
    %12 = vector.extract_strided_slice %10 {offsets = [4, 0, 0], sizes = [4, 8, 8], strides = [1, 1, 1]} : vector<12x8x8xf32> to vector<4x8x8xf32>
    %13 = vector.extract_strided_slice %10 {offsets = [8, 0, 0], sizes = [4, 8, 8], strides = [1, 1, 1]} : vector<12x8x8xf32> to vector<4x8x8xf32>
    %14 = arith.truncf %11 : vector<4x8x8xf32> to vector<4x8x8xbf16>
    %15 = arith.truncf %12 : vector<4x8x8xf32> to vector<4x8x8xbf16>
    "tpu.trace_start"() <{level = 10 : i32, message = "bqd,bkd->bqk"}> : () -> ()
    %cst_8 = arith.constant dense<0.000000e+00> : vector<4x8x8xf32>
    %16 = tpu.matmul %14, %15, %cst_8 {dimension_numbers = #tpu.dot_dimension_numbers<[2], [2], [1], [1], [0, 0, 0, 1, 1, 1], [0], [0]>} : vector<4x8x8xbf16>, vector<4x8x8xbf16>, vector<4x8x8xf32> -> vector<4x8x8xf32>
    "tpu.trace_stop"() : () -> ()
    %c1_i32 = arith.constant 1 : i32
    %17 = arith.muli %arg0, %c1_i32 : i32
    %c0_i32 = arith.constant 0 : i32
    %18 = arith.addi %17, %c0_i32 : i32
    %19 = arith.index_cast %18 : i32 to index
    %20 = memref.load %arg1[%19] : memref<2xi32, #tpu.memory_space<smem>>
    %21 = vector.broadcast %20 : i32 to vector<1x1x1xi32>
    %22 = vector.shape_cast %21 : vector<1x1x1xi32> to vector<1x1x1x1xi32>
    %23 = vector.shape_cast %22 : vector<1x1x1x1xi32> to vector<1x1x1x1xi32>
    %24 = vector.broadcast %23 : vector<1x1x1x1xi32> to vector<4x1x1x1xi32>
    %25 = vector.shape_cast %24 : vector<4x1x1x1xi32> to vector<4x1x1xi32>
    %26 = tpu.iota {dimensions = array<i32: 2>} : vector<4x1x8xi32>
    %27 = vector.broadcast %25 : vector<4x1x1xi32> to vector<4x1x8xi32>
    %28 = arith.cmpi slt, %26, %27 : vector<4x1x8xi32>
    %cst_9 = arith.constant 1.000000e+30 : f32
    %cst_10 = arith.constant -1.000000e+06 : f32
    %29 = vector.broadcast %cst_9 : f32 to vector<4x1x8xf32>
    %30 = vector.broadcast %cst_10 : f32 to vector<4x1x8xf32>
    %31 = arith.select %28, %29, %30 : vector<4x1x8xi1>, vector<4x1x8xf32>
    %32 = vector.broadcast %31 : vector<4x1x8xf32> to vector<4x8x8xf32>
    %33 = arith.minimumf %16, %32 : vector<4x8x8xf32>
    %cst_11 = arith.constant dense<0xFF800000> : vector<4x8xf32>
    %34 = vector.multi_reduction <maximumf>, %33, %cst_11 [2] : vector<4x8x8xf32> to vector<4x8xf32>
    %35 = vector.shape_cast %34 : vector<4x8xf32> to vector<4x8x1xf32>
    %36 = vector.broadcast %35 : vector<4x8x1xf32> to vector<4x8x8xf32>
    %37 = arith.subf %33, %36 : vector<4x8x8xf32>
    %38 = math.exp %37 : vector<4x8x8xf32>
    %cst_12 = arith.constant dense<0.000000e+00> : vector<4x8xf32>
    %39 = vector.multi_reduction <add>, %38, %cst_12 [2] : vector<4x8x8xf32> to vector<4x8xf32>
    %40 = vector.shape_cast %39 : vector<4x8xf32> to vector<4x8x1xf32>
    %41 = tpu.reciprocal %40 {approx = true} : vector<4x8x1xf32> -> vector<4x8x1xf32>
    %42 = vector.broadcast %41 : vector<4x8x1xf32> to vector<4x8x8xf32>
    %43 = arith.mulf %38, %42 : vector<4x8x8xf32>
    %44 = arith.truncf %43 : vector<4x8x8xf32> to vector<4x8x8xbf16>
    %45 = arith.truncf %13 : vector<4x8x8xf32> to vector<4x8x8xbf16>
    "tpu.trace_start"() <{level = 10 : i32, message = "bqk,bkd->bqd"}> : () -> ()
    %cst_13 = arith.constant dense<0.000000e+00> : vector<4x8x8xf32>
    %46 = tpu.matmul %44, %45, %cst_13 {dimension_numbers = #tpu.dot_dimension_numbers<[2], [1], [1], [2], [0, 0, 0, 1, 1, 2], [0], [0]>} : vector<4x8x8xbf16>, vector<4x8x8xbf16>, vector<4x8x8xf32> -> vector<4x8x8xf32>
    "tpu.trace_stop"() : () -> ()
    %47 = arith.truncf %46 : vector<4x8x8xf32> to vector<4x8x8xbf16>
    %c0_14 = arith.constant 0 : index
    %c0_15 = arith.constant 0 : index
    %c0_16 = arith.constant 0 : index
    %48 = vector.load %arg5[%c0_14, %c0_15, %c0_16] : memref<4x8x32xbf16, #tpu.memory_space<vmem>>, vector<4x8x32xbf16>
    "tpu.trace_start"() <{level = 10 : i32, message = "hnd,hdk->hnk"}> : () -> ()
    %cst_17 = arith.constant dense<0.000000e+00> : vector<4x8x32xf32>
    %49 = tpu.matmul %47, %48, %cst_17 {dimension_numbers = #tpu.dot_dimension_numbers<[2], [1], [1], [2], [0, 0, 0, 1, 1, 2], [0], [0]>} : vector<4x8x8xbf16>, vector<4x8x32xbf16>, vector<4x8x32xf32> -> vector<4x8x32xf32>
    "tpu.trace_stop"() : () -> ()
    %cst_18 = arith.constant dense<0.000000e+00> : vector<8x32xf32>
    %50 = vector.multi_reduction <add>, %49, %cst_18 [0] : vector<4x8x32xf32> to vector<8x32xf32>
    %c0_19 = arith.constant 0 : index
    %c0_20 = arith.constant 0 : index
    %51 = vector.load %arg6[%c0_19, %c0_20] : memref<1x32xf32, #tpu.memory_space<vmem>>, vector<1x32xf32>
    %52 = vector.broadcast %51 : vector<1x32xf32> to vector<8x32xf32>
    %53 = arith.addf %50, %52 : vector<8x32xf32>
    %54 = arith.addf %53, %1 : vector<8x32xf32>
    %cst_21 = arith.constant dense<0.000000e+00> : vector<8xf32>
    %55 = vector.multi_reduction <add>, %54, %cst_21 [1] : vector<8x32xf32> to vector<8xf32>
    %56 = vector.shape_cast %55 : vector<8xf32> to vector<8x1xf32>
    %cst_22 = arith.constant 3.200000e+01 : f32
    %57 = vector.broadcast %cst_22 : f32 to vector<8x1xf32>
    %58 = arith.divf %56, %57 : vector<8x1xf32>
    %59 = vector.broadcast %58 : vector<8x1xf32> to vector<8x32xf32>
    %60 = arith.subf %54, %59 : vector<8x32xf32>
    %61 = arith.mulf %60, %60 : vector<8x32xf32>
    %cst_23 = arith.constant dense<0.000000e+00> : vector<8xf32>
    %62 = vector.multi_reduction <add>, %61, %cst_23 [1] : vector<8x32xf32> to vector<8xf32>
    %63 = vector.shape_cast %62 : vector<8xf32> to vector<8x1xf32>
    %cst_24 = arith.constant 3.200000e+01 : f32
    %64 = vector.broadcast %cst_24 : f32 to vector<8x1xf32>
    %65 = arith.divf %63, %64 : vector<8x1xf32>
    %66 = vector.broadcast %58 : vector<8x1xf32> to vector<8x32xf32>
    %67 = arith.subf %54, %66 : vector<8x32xf32>
    %cst_25 = arith.constant 9.99999974E-6 : f32
    %68 = vector.broadcast %cst_25 : f32 to vector<8x1xf32>
    %69 = arith.addf %65, %68 : vector<8x1xf32>
    %70 = math.rsqrt %69 : vector<8x1xf32>
    %71 = vector.broadcast %70 : vector<8x1xf32> to vector<8x32xf32>
    %72 = arith.mulf %67, %71 : vector<8x32xf32>
    %c0_26 = arith.constant 0 : index
    %c0_27 = arith.constant 0 : index
    %73 = vector.load %arg7[%c0_26, %c0_27] : memref<1x32xf32, #tpu.memory_space<vmem>>, vector<1x32xf32>
    %74 = vector.broadcast %73 : vector<1x32xf32> to vector<8x32xf32>
    %75 = arith.mulf %72, %74 : vector<8x32xf32>
    %c0_28 = arith.constant 0 : index
    %c0_29 = arith.constant 0 : index
    %76 = vector.load %arg8[%c0_28, %c0_29] : memref<1x32xf32, #tpu.memory_space<vmem>>, vector<1x32xf32>
    %77 = vector.broadcast %76 : vector<1x32xf32> to vector<8x32xf32>
    %78 = arith.addf %75, %77 : vector<8x32xf32>
    %79 = arith.truncf %78 : vector<8x32xf32> to vector<8x32xbf16>
    %c0_30 = arith.constant 0 : index
    %c0_31 = arith.constant 0 : index
    %80 = vector.load %arg9[%c0_30, %c0_31] : memref<32x64xbf16, #tpu.memory_space<vmem>>, vector<32x64xbf16>
    %cst_32 = arith.constant dense<0.000000e+00> : vector<8x64xf32>
    %81 = tpu.matmul %79, %80, %cst_32 {dimension_numbers = #tpu.dot_dimension_numbers<[1], [0], [0], [1], [0, 0, 1, 1], [], []>} : vector<8x32xbf16>, vector<32x64xbf16>, vector<8x64xf32> -> vector<8x64xf32>
    %c0_33 = arith.constant 0 : index
    %c0_34 = arith.constant 0 : index
    %82 = vector.load %arg10[%c0_33, %c0_34] : memref<1x64xf32, #tpu.memory_space<vmem>>, vector<1x64xf32>
    %83 = vector.broadcast %82 : vector<1x64xf32> to vector<8x64xf32>
    %84 = arith.addf %81, %83 : vector<8x64xf32>
    %cst_35 = arith.constant 0.000000e+00 : f32
    %85 = vector.broadcast %cst_35 : f32 to vector<8x64xf32>
    %86 = arith.maximumf %84, %85 : vector<8x64xf32>
    %87 = arith.truncf %86 : vector<8x64xf32> to vector<8x64xbf16>
    %c0_36 = arith.constant 0 : index
    %c0_37 = arith.constant 0 : index
    %88 = vector.load %arg11[%c0_36, %c0_37] : memref<64x32xbf16, #tpu.memory_space<vmem>>, vector<64x32xbf16>
    %cst_38 = arith.constant dense<0.000000e+00> : vector<8x32xf32>
    %89 = tpu.matmul %87, %88, %cst_38 {dimension_numbers = #tpu.dot_dimension_numbers<[1], [0], [0], [1], [0, 0, 1, 1], [], []>} : vector<8x64xbf16>, vector<64x32xbf16>, vector<8x32xf32> -> vector<8x32xf32>
    %c0_39 = arith.constant 0 : index
    %c0_40 = arith.constant 0 : index
    %90 = vector.load %arg12[%c0_39, %c0_40] : memref<1x32xf32, #tpu.memory_space<vmem>>, vector<1x32xf32>
    %91 = vector.broadcast %90 : vector<1x32xf32> to vector<8x32xf32>
    %92 = arith.addf %89, %91 : vector<8x32xf32>
    %93 = arith.addf %92, %78 : vector<8x32xf32>
    %cst_41 = arith.constant dense<0.000000e+00> : vector<8xf32>
    %94 = vector.multi_reduction <add>, %93, %cst_41 [1] : vector<8x32xf32> to vector<8xf32>
    %95 = vector.shape_cast %94 : vector<8xf32> to vector<8x1xf32>
    %cst_42 = arith.constant 3.200000e+01 : f32
    %96 = vector.broadcast %cst_42 : f32 to vector<8x1xf32>
    %97 = arith.divf %95, %96 : vector<8x1xf32>
    %98 = vector.broadcast %97 : vector<8x1xf32> to vector<8x32xf32>
    %99 = arith.subf %93, %98 : vector<8x32xf32>
    %100 = arith.mulf %99, %99 : vector<8x32xf32>
    %cst_43 = arith.constant dense<0.000000e+00> : vector<8xf32>
    %101 = vector.multi_reduction <add>, %100, %cst_43 [1] : vector<8x32xf32> to vector<8xf32>
    %102 = vector.shape_cast %101 : vector<8xf32> to vector<8x1xf32>
    %cst_44 = arith.constant 3.200000e+01 : f32
    %103 = vector.broadcast %cst_44 : f32 to vector<8x1xf32>
    %104 = arith.divf %102, %103 : vector<8x1xf32>
    %105 = vector.broadcast %97 : vector<8x1xf32> to vector<8x32xf32>
    %106 = arith.subf %93, %105 : vector<8x32xf32>
    %cst_45 = arith.constant 9.99999974E-6 : f32
    %107 = vector.broadcast %cst_45 : f32 to vector<8x1xf32>
    %108 = arith.addf %104, %107 : vector<8x1xf32>
    %109 = math.rsqrt %108 : vector<8x1xf32>
    %110 = vector.broadcast %109 : vector<8x1xf32> to vector<8x32xf32>
    %111 = arith.mulf %106, %110 : vector<8x32xf32>
    %c0_46 = arith.constant 0 : index
    %c0_47 = arith.constant 0 : index
    %112 = vector.load %arg13[%c0_46, %c0_47] : memref<1x32xf32, #tpu.memory_space<vmem>>, vector<1x32xf32>
    %113 = vector.broadcast %112 : vector<1x32xf32> to vector<8x32xf32>
    %114 = arith.mulf %111, %113 : vector<8x32xf32>
    %c0_48 = arith.constant 0 : index
    %c0_49 = arith.constant 0 : index
    %115 = vector.load %arg14[%c0_48, %c0_49] : memref<1x32xf32, #tpu.memory_space<vmem>>, vector<1x32xf32>
    %116 = vector.broadcast %115 : vector<1x32xf32> to vector<8x32xf32>
    %117 = arith.addf %114, %116 : vector<8x32xf32>
    %118 = vector.shape_cast %117 : vector<8x32xf32> to vector<1x8x32xf32>
    %c0_50 = arith.constant 0 : index
    %c0_51 = arith.constant 0 : index
    %c0_52 = arith.constant 0 : index
    %119 = vector.load %arg15[%c0_50, %c0_51, %c0_52] : memref<1x8x32xf32, #tpu.memory_space<vmem>>, vector<1x8x32xf32>
    tpu.vector_store %arg15[%c0_50, %c0_51, %c0_52], %118 {strides = array<i32>} : memref<1x8x32xf32, #tpu.memory_space<vmem>>, vector<1x8x32xf32>,
    return
  }
  func.func @transform_0(%arg0: i32, %arg1: memref<2xi32, #tpu.memory_space<smem>>) -> (i32, i32, i32) {
    %c0_i32 = arith.constant 0 : i32
    %c0_i32_0 = arith.constant 0 : i32
    %c0_i32_1 = arith.constant 0 : i32
    return %arg0, %c0_i32, %c0_i32_0 : i32, i32, i32
  }
  func.func @transform_1(%arg0: i32, %arg1: memref<2xi32, #tpu.memory_space<smem>>) -> (i32, i32, i32) {
    %c0_i32 = arith.constant 0 : i32
    %c0_i32_0 = arith.constant 0 : i32
    %c0_i32_1 = arith.constant 0 : i32
    %c0_i32_2 = arith.constant 0 : i32
    return %c0_i32, %c0_i32_0, %c0_i32_1 : i32, i32, i32
  }
  func.func @transform_2(%arg0: i32, %arg1: memref<2xi32, #tpu.memory_space<smem>>) -> (i32, i32, i32) {
    %c0_i32 = arith.constant 0 : i32
    %c0_i32_0 = arith.constant 0 : i32
    %c0_i32_1 = arith.constant 0 : i32
    %c0_i32_2 = arith.constant 0 : i32
    return %c0_i32, %c0_i32_0, %c0_i32_1 : i32, i32, i32
  }
  func.func @transform_3(%arg0: i32, %arg1: memref<2xi32, #tpu.memory_space<smem>>) -> (i32, i32, i32) {
    %c0_i32 = arith.constant 0 : i32
    %c0_i32_0 = arith.constant 0 : i32
    %c0_i32_1 = arith.constant 0 : i32
    %c0_i32_2 = arith.constant 0 : i32
    return %c0_i32, %c0_i32_0, %c0_i32_1 : i32, i32, i32
  }
  func.func @transform_4(%arg0: i32, %arg1: memref<2xi32, #tpu.memory_space<smem>>) -> (i32, i32) {
    %c0_i32 = arith.constant 0 : i32
    %c0_i32_0 = arith.constant 0 : i32
    %c0_i32_1 = arith.constant 0 : i32
    return %c0_i32, %c0_i32_0 : i32, i32
  }
  func.func @transform_5(%arg0: i32, %arg1: memref<2xi32, #tpu.memory_space<smem>>) -> (i32, i32) {
    %c0_i32 = arith.constant 0 : i32
    %c0_i32_0 = arith.constant 0 : i32
    %c0_i32_1 = arith.constant 0 : i32
    return %c0_i32, %c0_i32_0 : i32, i32
  }
  func.func @transform_6(%arg0: i32, %arg1: memref<2xi32, #tpu.memory_space<smem>>) -> (i32, i32) {
    %c0_i32 = arith.constant 0 : i32
    %c0_i32_0 = arith.constant 0 : i32
    %c0_i32_1 = arith.constant 0 : i32
    return %c0_i32, %c0_i32_0 : i32, i32
  }
  func.func @transform_7(%arg0: i32, %arg1: memref<2xi32, #tpu.memory_space<smem>>) -> (i32, i32) {
    %c0_i32 = arith.constant 0 : i32
    %c0_i32_0 = arith.constant 0 : i32
    %c0_i32_1 = arith.constant 0 : i32
    return %c0_i32, %c0_i32_0 : i32, i32
  }
  func.func @transform_8(%arg0: i32, %arg1: memref<2xi32, #tpu.memory_space<smem>>) -> (i32, i32) {
    %c0_i32 = arith.constant 0 : i32
    %c0_i32_0 = arith.constant 0 : i32
    %c0_i32_1 = arith.constant 0 : i32
    return %c0_i32, %c0_i32_0 : i32, i32
  }
  func.func @transform_9(%arg0: i32, %arg1: memref<2xi32, #tpu.memory_space<smem>>) -> (i32, i32) {
    %c0_i32 = arith.constant 0 : i32
    %c0_i32_0 = arith.constant 0 : i32
    %c0_i32_1 = arith.constant 0 : i32
    return %c0_i32, %c0_i32_0 : i32, i32
  }
  func.func @transform_10(%arg0: i32, %arg1: memref<2xi32, #tpu.memory_space<smem>>) -> (i32, i32) {
    %c0_i32 = arith.constant 0 : i32
    %c0_i32_0 = arith.constant 0 : i32
    %c0_i32_1 = arith.constant 0 : i32
    return %c0_i32, %c0_i32_0 : i32, i32
  }
  func.func @transform_11(%arg0: i32, %arg1: memref<2xi32, #tpu.memory_space<smem>>) -> (i32, i32) {
    %c0_i32 = arith.constant 0 : i32
    %c0_i32_0 = arith.constant 0 : i32
    %c0_i32_1 = arith.constant 0 : i32
    return %c0_i32, %c0_i32_0 : i32, i32
  }
  func.func @transform_12(%arg0: i32, %arg1: memref<2xi32, #tpu.memory_space<smem>>) -> (i32, i32) {
    %c0_i32 = arith.constant 0 : i32
    %c0_i32_0 = arith.constant 0 : i32
    %c0_i32_1 = arith.constant 0 : i32
    return %c0_i32, %c0_i32_0 : i32, i32
  }
  func.func @transform_13(%arg0: i32, %arg1: memref<2xi32, #tpu.memory_space<smem>>) -> (i32, i32, i32) {
    %c0_i32 = arith.constant 0 : i32
    %c0_i32_0 = arith.constant 0 : i32
    %c0_i32_1 = arith.constant 0 : i32
    return %arg0, %c0_i32, %c0_i32_0 : i32, i32, i32
  }
}

</mosaic_0001>

<llo_original>
// kernel: tpu_custom_call.1
$region0: #{tpu_custom_call.1}
  #allocation0 [shape = 'u32[]', space=smem, size = 0x4, offset = 0x4, fixed_abs, tag = 'smem constant byte address 0x4 - core index']
  #allocation1 [shape = 'u32[144,128]{1,0:T(1,128)}', space=vmem, size = 0x12000, scoped, tag = 'internal scratch']
  #allocation2 [shape = 's32[1]{0}', space=sflag, size = 0x4, scoped, tag = 'scoped memory for tpu_custom_call.1']
  #allocation3 [shape = 'u8[512]{0}', space=smem, size = 0x200, scoped, tag = 'prefetched SMEM operand 0']
  %s0 = inlined_call_operand.vmem [shape: s32[2], index: 0, kind: input, shape index: {}]
  %s1 = inlined_call_operand.vmem [shape: f32[2,8,32], index: 1, kind: input, shape index: {}]
  %s2 = inlined_call_operand.vmem [shape: bf16[12,32,8], index: 2, kind: input, shape index: {}]
  %s3 = inlined_call_operand.vmem [shape: f32[12,1,8], index: 3, kind: input, shape index: {}]
  %s4 = inlined_call_operand.vmem [shape: bf16[4,8,32], index: 4, kind: input, shape index: {}]
  %s5 = inlined_call_operand.vmem [shape: f32[1,32], index: 5, kind: input, shape index: {}]
  %s6 = inlined_call_operand.vmem [shape: f32[1,32], index: 6, kind: input, shape index: {}]
  %s7 = inlined_call_operand.vmem [shape: f32[1,32], index: 7, kind: input, shape index: {}]
  %s8 = inlined_call_operand.vmem [shape: bf16[32,64], index: 8, kind: input, shape index: {}]
  %s9 = inlined_call_operand.vmem [shape: f32[1,64], index: 9, kind: input, shape index: {}]
  %s10 = inlined_call_operand.vmem [shape: bf16[64,32], index: 10, kind: input, shape index: {}]
  %s11 = inlined_call_operand.vmem [shape: f32[1,32], index: 11, kind: input, shape index: {}]
  %s12 = inlined_call_operand.vmem [shape: f32[1,32], index: 12, kind: input, shape index: {}]
  %s13 = inlined_call_operand.vmem [shape: f32[1,32], index: 13, kind: input, shape index: {}]
  %s14 = inlined_call_operand.hbm [shape: f32[2,8,32], index: 14, kind: output, shape index: {}]
  %s15 = sld [smem:[#allocation0]]
  $region85: #{tpu_custom_call.1} parent=0
    _
  %s17 = ssub.s32 1, %s15
  %s18 = scalar_select 0, %s17, %s15
  %s19 = sshll.u32 %s0, 4
  %s20 = int_to_ptr.vmem [resolvable:$true] %s19
  %22 = dma.vmem_to_smem %s20, 16, [#allocation3], [#allocation2]
  %23 = dma.done [#allocation2], 16
  %24 = sfence
  $region1: #{tpu_custom_call.1} parent=0
    #allocation4 [shape = 'u8[8192]{0}', space=vmem, size = 0x2000, scoped, tag = 'output window, operand 0']
    #allocation5 [shape = 's32[2]{0}', space=sflag, size = 0x8, scoped, tag = 'scoped memory for tpu_custom_call.1']
    %25 = vsyncpa [#allocation5], 0
    %s26 = scalar_lea.sflag [#allocation5], 1
    %27 = vsyncpa %s26, 0
    loop: start=0, step=1, limit=4
    $region2: #{tpu_custom_call.1} parent=1 // loop_pre_header
      _
    $region3: #{tpu_custom_call.1} parent=1 // loop_header
      %s29 = sphi 0, %s33
      %p30 = scmp.ge.s32.totalorder %s29, 4
      %s39 = sphi 0, %s41
      %s42 = sphi 0, %s39
      %s43 = sphi 0, %s42
      %s59 = sphi 0, %s43
      %s63 = sphi 0, %s63
      %s65 = sphi 0, %s63
      %s66 = sphi 0, %s65
      %s80 = sphi 0, %s66
      %s84 = sphi 0, %s84
      %s86 = sphi 0, %s84
      %s87 = sphi 0, %s86
      %s101 = sphi 0, %s87
      %s105 = sphi 0, %s105
      %s107 = sphi 0, %s105
      %s108 = sphi 0, %s107
      %s122 = sphi 0, %s108
      %s126 = sphi 0, %s126
      %s128 = sphi 0, %s126
      %s129 = sphi 0, %s128
      %s143 = sphi 0, %s129
      %s147 = sphi 0, %s147
      %s149 = sphi 0, %s147
      %s150 = sphi 0, %s149
      %s164 = sphi 0, %s150
      %s168 = sphi 0, %s168
      %s170 = sphi 0, %s168
      %s171 = sphi 0, %s170
      %s185 = sphi 0, %s171
      %s189 = sphi 0, %s189
      %s191 = sphi 0, %s189
      %s192 = sphi 0, %s191
      %s206 = sphi 0, %s192
      %s210 = sphi 0, %s210
      %s212 = sphi 0, %s210
      %s213 = sphi 0, %s212
      %s227 = sphi 0, %s213
      %s231 = sphi 0, %s231
      %s233 = sphi 0, %s231
      %s234 = sphi 0, %s233
      %s248 = sphi 0, %s234
      %s252 = sphi 0, %s252
      %s254 = sphi 0, %s252
      %s255 = sphi 0, %s254
      %s269 = sphi 0, %s255
      %s273 = sphi 0, %s273
      %s275 = sphi 0, %s273
      %s276 = sphi 0, %s275
      %s290 = sphi 0, %s276
      %s294 = sphi 0, %s294
      %s296 = sphi 0, %s294
      %s297 = sphi 0, %s296
      %s311 = sphi 0, %s297
      %s317 = sphi 0, %s319
      %s320 = sphi 0, %s317
      %s321 = sphi 0, %s320
      %s337 = sphi 0, %s321
    $region4: #{tpu_custom_call.1} parent=1 // loop_header_branch
      %32 = sbr.rel (%p30) target = $region8
    $region5: #{tpu_custom_call.1} parent=1 // loop_body
      %s34 = ssub.s32 %s29, 1
      %s35 = ssub.s32 %s29, 2
      %s36 = sadd.s32 %s29, 1
      %s37 = ssub.s32 %s29, %s36
      %p38 = scmp.eq.s32.totalorder %s37, 0
      %s40 = sadd.s32 %s39, 1
      %s41 = scalar_select %p38, %s39, %s40
      %p44 = pneg %p38
      %p45 = scmp.eq.s32.totalorder %s29, 1
      %p46 = por %p44, %p45
      %p47 = scmp.ne.s32.totalorder %s39, %s42
      %p48 = scmp.eq.s32.totalorder %s29, 0
      %p49 = por %p47, %p48
      %p50 = scmp.ne.s32.totalorder %s39, %s42
      %p51 = scmp.eq.s32.totalorder %s34, 1
      %p52 = por %p50, %p51
      %p53 = scmp.ne.s32.totalorder %s42, %s43
      %p54 = scmp.eq.s32.totalorder %s34, 0
      %p55 = por %p53, %p54
      %p56 = scmp.ne.s32.totalorder %s42, %s43
      %p57 = scmp.eq.s32.totalorder %s35, 1
      %p58 = por %p56, %p57
      %p60 = scmp.ne.s32.totalorder %s43, %s59
      %p61 = scmp.eq.s32.totalorder %s35, 0
      %p62 = por %p60, %p61
      %s64 = sadd.s32 %s63, 1
      %p67 = scmp.eq.s32.totalorder %s29, 1
      %p68 = scmp.ne.s32.totalorder %s63, %s65
      %p69 = scmp.eq.s32.totalorder %s29, 0
      %p70 = por %p68, %p69
      %p71 = scmp.ne.s32.totalorder %s63, %s65
      %p72 = scmp.eq.s32.totalorder %s34, 1
      %p73 = por %p71, %p72
      %p74 = scmp.ne.s32.totalorder %s65, %s66
      %p75 = scmp.eq.s32.totalorder %s34, 0
      %p76 = por %p74, %p75
      %p77 = scmp.ne.s32.totalorder %s65, %s66
      %p78 = scmp.eq.s32.totalorder %s35, 1
      %p79 = por %p77, %p78
      %p81 = scmp.ne.s32.totalorder %s66, %s80
      %p82 = scmp.eq.s32.totalorder %s35, 0
      %p83 = por %p81, %p82
      %s85 = sadd.s32 %s84, 1
      %p88 = scmp.eq.s32.totalorder %s29, 1
      %p89 = scmp.ne.s32.totalorder %s84, %s86
      %p90 = scmp.eq.s32.totalorder %s29, 0
      %p91 = por %p89, %p90
      %p92 = scmp.ne.s32.totalorder %s84, %s86
      %p93 = scmp.eq.s32.totalorder %s34, 1
      %p94 = por %p92, %p93
      %p95 = scmp.ne.s32.totalorder %s86, %s87
      %p96 = scmp.eq.s32.totalorder %s34, 0
      %p97 = por %p95, %p96
      %p98 = scmp.ne.s32.totalorder %s86, %s87
      %p99 = scmp.eq.s32.totalorder %s35, 1
      %p100 = por %p98, %p99
      %p102 = scmp.ne.s32.totalorder %s87, %s101
      %p103 = scmp.eq.s32.totalorder %s35, 0
      %p104 = por %p102, %p103
      %s106 = sadd.s32 %s105, 1
      %p109 = scmp.eq.s32.totalorder %s29, 1
      %p110 = scmp.ne.s32.totalorder %s105, %s107
      %p111 = scmp.eq.s32.totalorder %s29, 0
      %p112 = por %p110, %p111
      %p113 = scmp.ne.s32.totalorder %s105, %s107
      %p114 = scmp.eq.s32.totalorder %s34, 1
      %p115 = por %p113, %p114
      %p116 = scmp.ne.s32.totalorder %s107, %s108
      %p117 = scmp.eq.s32.totalorder %s34, 0
      %p118 = por %p116, %p117
      %p119 = scmp.ne.s32.totalorder %s107, %s108
      %p120 = scmp.eq.s32.totalorder %s35, 1
      %p121 = por %p119, %p120
      %p123 = scmp.ne.s32.totalorder %s108, %s122
      %p124 = scmp.eq.s32.totalorder %s35, 0
      %p125 = por %p123, %p124
      %s127 = sadd.s32 %s126, 1
      %p130 = scmp.eq.s32.totalorder %s29, 1
      %p131 = scmp.ne.s32.totalorder %s126, %s128
      %p132 = scmp.eq.s32.totalorder %s29, 0
      %p133 = por %p131, %p132
      %p134 = scmp.ne.s32.totalorder %s126, %s128
      %p135 = scmp.eq.s32.totalorder %s34, 1
      %p136 = por %p134, %p135
      %p137 = scmp.ne.s32.totalorder %s128, %s129
      %p138 = scmp.eq.s32.totalorder %s34, 0
      %p139 = por %p137, %p138
      %p140 = scmp.ne.s32.totalorder %s128, %s129
      %p141 = scmp.eq.s32.totalorder %s35, 1
      %p142 = por %p140, %p141
      %p144 = scmp.ne.s32.totalorder %s129, %s143
      %p145 = scmp.eq.s32.totalorder %s35, 0
      %p146 = por %p144, %p145
      %s148 = sadd.s32 %s147, 1
      %p151 = scmp.eq.s32.totalorder %s29, 1
      %p152 = scmp.ne.s32.totalorder %s147, %s149
      %p153 = scmp.eq.s32.totalorder %s29, 0
      %p154 = por %p152, %p153
      %p155 = scmp.ne.s32.totalorder %s147, %s149
      %p156 = scmp.eq.s32.totalorder %s34, 1
      %p157 = por %p155, %p156
      %p158 = scmp.ne.s32.totalorder %s149, %s150
      %p159 = scmp.eq.s32.totalorder %s34, 0
      %p160 = por %p158, %p159
      %p161 = scmp.ne.s32.totalorder %s149, %s150
      %p162 = scmp.eq.s32.totalorder %s35, 1
      %p163 = por %p161, %p162
      %p165 = scmp.ne.s32.totalorder %s150, %s164
      %p166 = scmp.eq.s32.totalorder %s35, 0
      %p167 = por %p165, %p166
      %s169 = sadd.s32 %s168, 1
      %p172 = scmp.eq.s32.totalorder %s29, 1
      %p173 = scmp.ne.s32.totalorder %s168, %s170
      %p174 = scmp.eq.s32.totalorder %s29, 0
      %p175 = por %p173, %p174
      %p176 = scmp.ne.s32.totalorder %s168, %s170
      %p177 = scmp.eq.s32.totalorder %s34, 1
      %p178 = por %p176, %p177
      %p179 = scmp.ne.s32.totalorder %s170, %s171
      %p180 = scmp.eq.s32.totalorder %s34, 0
      %p181 = por %p179, %p180
      %p182 = scmp.ne.s32.totalorder %s170, %s171
      %p183 = scmp.eq.s32.totalorder %s35, 1
      %p184 = por %p182, %p183
      %p186 = scmp.ne.s32.totalorder %s171, %s185
      %p187 = scmp.eq.s32.totalorder %s35, 0
      %p188 = por %p186, %p187
      %s190 = sadd.s32 %s189, 1
      %p193 = scmp.eq.s32.totalorder %s29, 1
      %p194 = scmp.ne.s32.totalorder %s189, %s191
      %p195 = scmp.eq.s32.totalorder %s29, 0
      %p196 = por %p194, %p195
      %p197 = scmp.ne.s32.totalorder %s189, %s191
      %p198 = scmp.eq.s32.totalorder %s34, 1
      %p199 = por %p197, %p198
      %p200 = scmp.ne.s32.totalorder %s191, %s192
      %p201 = scmp.eq.s32.totalorder %s34, 0
      %p202 = por %p200, %p201
      %p203 = scmp.ne.s32.totalorder %s191, %s192
      %p204 = scmp.eq.s32.totalorder %s35, 1
      %p205 = por %p203, %p204
      %p207 = scmp.ne.s32.totalorder %s192, %s206
      %p208 = scmp.eq.s32.totalorder %s35, 0
      %p209 = por %p207, %p208
      %s211 = sadd.s32 %s210, 1
      %p214 = scmp.eq.s32.totalorder %s29, 1
      %p215 = scmp.ne.s32.totalorder %s210, %s212
      %p216 = scmp.eq.s32.totalorder %s29, 0
      %p217 = por %p215, %p216
      %p218 = scmp.ne.s32.totalorder %s210, %s212
      %p219 = scmp.eq.s32.totalorder %s34, 1
      %p220 = por %p218, %p219
      %p221 = scmp.ne.s32.totalorder %s212, %s213
      %p222 = scmp.eq.s32.totalorder %s34, 0
      %p223 = por %p221, %p222
      %p224 = scmp.ne.s32.totalorder %s212, %s213
      %p225 = scmp.eq.s32.totalorder %s35, 1
      %p226 = por %p224, %p225
      %p228 = scmp.ne.s32.totalorder %s213, %s227
      %p229 = scmp.eq.s32.totalorder %s35, 0
      %p230 = por %p228, %p229
      %s232 = sadd.s32 %s231, 1
      %p235 = scmp.eq.s32.totalorder %s29, 1
      %p236 = scmp.ne.s32.totalorder %s231, %s233
      %p237 = scmp.eq.s32.totalorder %s29, 0
      %p238 = por %p236, %p237
      %p239 = scmp.ne.s32.totalorder %s231, %s233
      %p240 = scmp.eq.s32.totalorder %s34, 1
      %p241 = por %p239, %p240
      %p242 = scmp.ne.s32.totalorder %s233, %s234
      %p243 = scmp.eq.s32.totalorder %s34, 0
      %p244 = por %p242, %p243
      %p245 = scmp.ne.s32.totalorder %s233, %s234
      %p246 = scmp.eq.s32.totalorder %s35, 1
      %p247 = por %p245, %p246
      %p249 = scmp.ne.s32.totalorder %s234, %s248
      %p250 = scmp.eq.s32.totalorder %s35, 0
      %p251 = por %p249, %p250
      %s253 = sadd.s32 %s252, 1
      %p256 = scmp.eq.s32.totalorder %s29, 1
      %p257 = scmp.ne.s32.totalorder %s252, %s254
      %p258 = scmp.eq.s32.totalorder %s29, 0
      %p259 = por %p257, %p258
      %p260 = scmp.ne.s32.totalorder %s252, %s254
      %p261 = scmp.eq.s32.totalorder %s34, 1
      %p262 = por %p260, %p261
      %p263 = scmp.ne.s32.totalorder %s254, %s255
      %p264 = scmp.eq.s32.totalorder %s34, 0
      %p265 = por %p263, %p264
      %p266 = scmp.ne.s32.totalorder %s254, %s255
      %p267 = scmp.eq.s32.totalorder %s35, 1
      %p268 = por %p266, %p267
      %p270 = scmp.ne.s32.totalorder %s255, %s269
      %p271 = scmp.eq.s32.totalorder %s35, 0
      %p272 = por %p270, %p271
      %s274 = sadd.s32 %s273, 1
      %p277 = scmp.eq.s32.totalorder %s29, 1
      %p278 = scmp.ne.s32.totalorder %s273, %s275
      %p279 = scmp.eq.s32.totalorder %s29, 0
      %p280 = por %p278, %p279
      %p281 = scmp.ne.s32.totalorder %s273, %s275
      %p282 = scmp.eq.s32.totalorder %s34, 1
      %p283 = por %p281, %p282
      %p284 = scmp.ne.s32.totalorder %s275, %s276
      %p285 = scmp.eq.s32.totalorder %s34, 0
      %p286 = por %p284, %p285
      %p287 = scmp.ne.s32.totalorder %s275, %s276
      %p288 = scmp.eq.s32.totalorder %s35, 1
      %p289 = por %p287, %p288
      %p291 = scmp.ne.s32.totalorder %s276, %s290
      %p292 = scmp.eq.s32.totalorder %s35, 0
      %p293 = por %p291, %p292
      %s295 = sadd.s32 %s294, 1
      %p298 = scmp.eq.s32.totalorder %s29, 1
      %p299 = scmp.ne.s32.totalorder %s294, %s296
      %p300 = scmp.eq.s32.totalorder %s29, 0
      %p301 = por %p299, %p300
      %p302 = scmp.ne.s32.totalorder %s294, %s296
      %p303 = scmp.eq.s32.totalorder %s34, 1
      %p304 = por %p302, %p303
      %p305 = scmp.ne.s32.totalorder %s296, %s297
      %p306 = scmp.eq.s32.totalorder %s34, 0
      %p307 = por %p305, %p306
      %p308 = scmp.ne.s32.totalorder %s296, %s297
      %p309 = scmp.eq.s32.totalorder %s35, 1
      %p310 = por %p308, %p309
      %p312 = scmp.ne.s32.totalorder %s297, %s311
      %p313 = scmp.eq.s32.totalorder %s35, 0
      %p314 = por %p312, %p313
      %s315 = ssub.s32 %s29, %s36
      %p316 = scmp.eq.s32.totalorder %s315, 0
      %s318 = sadd.s32 %s317, 1
      %s319 = scalar_select %p316, %s317, %s318
      %p322 = pneg %p316
      %p323 = scmp.eq.s32.totalorder %s29, 1
      %p324 = por %p322, %p323
      %p325 = scmp.ne.s32.totalorder %s317, %s320
      %p326 = scmp.eq.s32.totalorder %s29, 0
      %p327 = por %p325, %p326
      %p328 = scmp.ne.s32.totalorder %s317, %s320
      %p329 = scmp.eq.s32.totalorder %s34, 1
      %p330 = por %p328, %p329
      %p331 = scmp.ne.s32.totalorder %s320, %s321
      %p332 = scmp.eq.s32.totalorder %s34, 0
      %p333 = por %p331, %p332
      %p334 = scmp.ne.s32.totalorder %s320, %s321
      %p335 = scmp.eq.s32.totalorder %s35, 1
      %p336 = por %p334, %p335
      %p338 = scmp.ne.s32.totalorder %s321, %s337
      %p339 = scmp.eq.s32.totalorder %s35, 0
      %p340 = por %p338, %p339
      %p341 = scmp.le.s32.totalorder 1, %s29
      %p342 = scmp.lt.s32.totalorder %s29, 3
      %p343 = pnand %p341, %p342
      %p344 = pneg %p343
      // Predicated region
      $region9: #{tpu_custom_call.1} parent=5 // pred_check
        _
      $region10: #{tpu_custom_call.1} parent=5 // pred_check_branch
        %346 = sbr.rel (%p343) target = $region12
      $region11: #{tpu_custom_call.1} parent=5 // pred_region
        %s347 = ssub.s32 %s29, 1
        // Predicated region
        $region13: #{tpu_custom_call.1} parent=11 // pred_check
          %p348 = pneg %p76
        $region14: #{tpu_custom_call.1} parent=11 // pred_check_branch
          %350 = sbr.rel (%p348) target = $region16
        $region15: #{tpu_custom_call.1} parent=11 // pred_region
          _
        $region16: #{tpu_custom_call.1} parent=11 // pred_fallthru
          _
        // Predicated region
        $region17: #{tpu_custom_call.1} parent=11 // pred_check
          %p351 = pneg %p97
        $region18: #{tpu_custom_call.1} parent=11 // pred_check_branch
          %353 = sbr.rel (%p351) target = $region20
        $region19: #{tpu_custom_call.1} parent=11 // pred_region
          _
        $region20: #{tpu_custom_call.1} parent=11 // pred_fallthru
          _
        // Predicated region
        $region21: #{tpu_custom_call.1} parent=11 // pred_check
          %p354 = pneg %p118
        $region22: #{tpu_custom_call.1} parent=11 // pred_check_branch
          %356 = sbr.rel (%p354) target = $region24
        $region23: #{tpu_custom_call.1} parent=11 // pred_region
          _
        $region24: #{tpu_custom_call.1} parent=11 // pred_fallthru
          _
        // Predicated region
        $region25: #{tpu_custom_call.1} parent=11 // pred_check
          %p357 = pneg %p139
        $region26: #{tpu_custom_call.1} parent=11 // pred_check_branch
          %359 = sbr.rel (%p357) target = $region28
        $region27: #{tpu_custom_call.1} parent=11 // pred_region
          _
        $region28: #{tpu_custom_call.1} parent=11 // pred_fallthru
          _
        // Predicated region
        $region29: #{tpu_custom_call.1} parent=11 // pred_check
          %p360 = pneg %p160
        $region30: #{tpu_custom_call.1} parent=11 // pred_check_branch
          %362 = sbr.rel (%p360) target = $region32
        $region31: #{tpu_custom_call.1} parent=11 // pred_region
          _
        $region32: #{tpu_custom_call.1} parent=11 // pred_fallthru
          _
        // Predicated region
        $region33: #{tpu_custom_call.1} parent=11 // pred_check
          %p363 = pneg %p181
        $region34: #{tpu_custom_call.1} parent=11 // pred_check_branch
          %365 = sbr.rel (%p363) target = $region36
        $region35: #{tpu_custom_call.1} parent=11 // pred_region
          _
        $region36: #{tpu_custom_call.1} parent=11 // pred_fallthru
          _
        // Predicated region
        $region37: #{tpu_custom_call.1} parent=11 // pred_check
          %p366 = pneg %p202
        $region38: #{tpu_custom_call.1} parent=11 // pred_check_branch
          %368 = sbr.rel (%p366) target = $region40
        $region39: #{tpu_custom_call.1} parent=11 // pred_region
          _
        $region40: #{tpu_custom_call.1} parent=11 // pred_fallthru
          _
        // Predicated region
        $region41: #{tpu_custom_call.1} parent=11 // pred_check
          %p369 = pneg %p223
        $region42: #{tpu_custom_call.1} parent=11 // pred_check_branch
          %371 = sbr.rel (%p369) target = $region44
        $region43: #{tpu_custom_call.1} parent=11 // pred_region
          _
        $region44: #{tpu_custom_call.1} parent=11 // pred_fallthru
          _
        // Predicated region
        $region45: #{tpu_custom_call.1} parent=11 // pred_check
          %p372 = pneg %p244
        $region46: #{tpu_custom_call.1} parent=11 // pred_check_branch
          %374 = sbr.rel (%p372) target = $region48
        $region47: #{tpu_custom_call.1} parent=11 // pred_region
          _
        $region48: #{tpu_custom_call.1} parent=11 // pred_fallthru
          _
        // Predicated region
        $region49: #{tpu_custom_call.1} parent=11 // pred_check
          %p375 = pneg %p265
        $region50: #{tpu_custom_call.1} parent=11 // pred_check_branch
          %377 = sbr.rel (%p375) target = $region52
        $region51: #{tpu_custom_call.1} parent=11 // pred_region
          _
        $region52: #{tpu_custom_call.1} parent=11 // pred_fallthru
          _
        // Predicated region
        $region53: #{tpu_custom_call.1} parent=11 // pred_check
          %p378 = pneg %p286
        $region54: #{tpu_custom_call.1} parent=11 // pred_check_branch
          %380 = sbr.rel (%p378) target = $region56
        $region55: #{tpu_custom_call.1} parent=11 // pred_region
          _
        $region56: #{tpu_custom_call.1} parent=11 // pred_fallthru
          _
        // Predicated region
        $region57: #{tpu_custom_call.1} parent=11 // pred_check
          %p381 = pneg %p307
        $region58: #{tpu_custom_call.1} parent=11 // pred_check_branch
          %383 = sbr.rel (%p381) target = $region60
        $region59: #{tpu_custom_call.1} parent=11 // pred_region
          _
        $region60: #{tpu_custom_call.1} parent=11 // pred_fallthru
          _
      $region12: #{tpu_custom_call.1} parent=5 // pred_fallthru
        _
      %p384 = scmp.lt.s32.totalorder %s29, 2
      // Predicated region
      $region61: #{tpu_custom_call.1} parent=5 // pred_check
        %p385 = pneg %p384
      $region62: #{tpu_custom_call.1} parent=5 // pred_check_branch
        %387 = sbr.rel (%p385) target = $region64
      $region63: #{tpu_custom_call.1} parent=5 // pred_region
        // Predicated region
        $region65: #{tpu_custom_call.1} parent=63 // pred_check
          %p388 = pneg %p49
        $region66: #{tpu_custom_call.1} parent=63 // pred_check_branch
          %390 = sbr.rel (%p388) target = $region68
        $region67: #{tpu_custom_call.1} parent=63 // pred_region
          %p391 = scmp.lt.s32.totalorder %s29, 1
          %s392 = scalar_select %p391, %s29, 1
          %s393 = smul.addr %s392, 8
          %s394 = scalar_lea.vmem %s1, %s393
        $region68: #{tpu_custom_call.1} parent=63 // pred_fallthru
          _
      $region64: #{tpu_custom_call.1} parent=5 // pred_fallthru
        _
      %p395 = scmp.le.s32.totalorder 1, %s29
      %p396 = scmp.lt.s32.totalorder %s29, 3
      %p397 = pnand %p395, %p396
      %p398 = pneg %p397
      // Predicated region
      $region69: #{tpu_custom_call.1} parent=5 // pred_check
        _
      $region70: #{tpu_custom_call.1} parent=5 // pred_check_branch
        %400 = sbr.rel (%p397) target = $region72
      $region71: #{tpu_custom_call.1} parent=5 // pred_region
        %s401 = ssub.s32 %s29, 1
        %p402 = scmp.lt.s32.totalorder %s34, 1
        %s403 = scalar_select %p402, %s34, 1
        %s404 = smul.addr %s403, 8
        %s405 = scalar_lea.vmem %s1, %s404
        %p406 = pneg %p55
        %p407 = pneg %p52
        %p408 = pneg %p76
        %p409 = pneg %p73
        %p410 = pneg %p97
        %p411 = pneg %p94
        %p412 = pneg %p118
        %p413 = pneg %p115
        %p414 = pneg %p139
        %p415 = pneg %p136
        %p416 = pneg %p160
        %p417 = pneg %p157
        %p418 = pneg %p181
        %p419 = pneg %p178
        %p420 = pneg %p202
        %p421 = pneg %p199
        %p422 = pneg %p223
        %p423 = pneg %p220
        %p424 = pneg %p244
        %p425 = pneg %p241
        %p426 = pneg %p265
        %p427 = pneg %p262
        %p428 = pneg %p286
        %p429 = pneg %p283
        %p430 = pneg %p307
        %p431 = pneg %p304
        %p432 = pneg %p333
        %p433 = pneg %p330
        %s434 = sand.u32 %s320, 1
        %s435 = scalar_lea.sflag [#allocation5], %s434
        %s436 = sand.u32 %s320, 1
        %s437 = smul.addr %s436, 8
        %s438 = scalar_lea.vmem [#allocation4], %s437
        %p439 = scmp.lt.s32.totalorder %s34, 1
        %s440 = scalar_select %p439, %s34, 1
        %s441 = smul.addr %s440, 8
        %s442 = scalar_lea.vmem %s1, %s441
        %v444 = vld [vmem:[%s442] sm:$0xff]
        %v445 = vpack.c.bf16 %v444, %v444
        %v446 = vld [vmem:[%s2] sm:$0xf]
        %v447 = vld [vmem:[%s2 + $0x4] sm:$0xf]
        %v448 = vld [vmem:[%s2 + $0x8] sm:$0xf]
        %v449 = vld [vmem:[%s2 + $0xc] sm:$0xf]
        %v450 = vld [vmem:[%s2 + $0x10] sm:$0xf]
        %v451 = vld [vmem:[%s2 + $0x14] sm:$0xf]
        %v452 = vld [vmem:[%s2 + $0x18] sm:$0xf]
        %v453 = vld [vmem:[%s2 + $0x1c] sm:$0xf]
        %v454 = vld [vmem:[%s2 + $0x20] sm:$0xf]
        %v455 = vld [vmem:[%s2 + $0x24] sm:$0xf]
        %v456 = vld [vmem:[%s2 + $0x28] sm:$0xf]
        %v457 = vld [vmem:[%s2 + $0x2c] sm:$0xf]
        %v458 = vld [vmem:[%s2 + $0x30] sm:$0xf]
        %v459 = vld [vmem:[%s2 + $0x34] sm:$0xf]
        %v460 = vld [vmem:[%s2 + $0x38] sm:$0xf]
        %v461 = vld [vmem:[%s2 + $0x3c] sm:$0xf]
        %v462 = vld [vmem:[%s2 + $0x40] sm:$0xf]
        %v463 = vld [vmem:[%s2 + $0x44] sm:$0xf]
        %v464 = vld [vmem:[%s2 + $0x48] sm:$0xf]
        %v465 = vld [vmem:[%s2 + $0x4c] sm:$0xf]
        %v466 = vld [vmem:[%s2 + $0x50] sm:$0xf]
        %v467 = vld [vmem:[%s2 + $0x54] sm:$0xf]
        %v468 = vld [vmem:[%s2 + $0x58] sm:$0xf]
        %v469 = vld [vmem:[%s2 + $0x5c] sm:$0xf]
        %v470 = vld [vmem:[%s2 + $0x60] sm:$0xf]
        %v471 = vld [vmem:[%s2 + $0x64] sm:$0xf]
        %v472 = vld [vmem:[%s2 + $0x68] sm:$0xf]
        %v473 = vld [vmem:[%s2 + $0x6c] sm:$0xf]
        %v474 = vld [vmem:[%s2 + $0x70] sm:$0xf]
        %v475 = vld [vmem:[%s2 + $0x74] sm:$0xf]
        %v476 = vld [vmem:[%s2 + $0x78] sm:$0xf]
        %v477 = vld [vmem:[%s2 + $0x7c] sm:$0xf]
        %v478 = vld [vmem:[%s2 + $0x80] sm:$0xf]
        %v479 = vld [vmem:[%s2 + $0x84] sm:$0xf]
        %v480 = vld [vmem:[%s2 + $0x88] sm:$0xf]
        %v481 = vld [vmem:[%s2 + $0x8c] sm:$0xf]
        %v482 = vld [vmem:[%s2 + $0x90] sm:$0xf]
        %v483 = vld [vmem:[%s2 + $0x94] sm:$0xf]
        %v484 = vld [vmem:[%s2 + $0x98] sm:$0xf]
        %v485 = vld [vmem:[%s2 + $0x9c] sm:$0xf]
        %v486 = vld [vmem:[%s2 + $0xa0] sm:$0xf]
        %v487 = vld [vmem:[%s2 + $0xa4] sm:$0xf]
        %v488 = vld [vmem:[%s2 + $0xa8] sm:$0xf]
        %v489 = vld [vmem:[%s2 + $0xac] sm:$0xf]
        %v490 = vld [vmem:[%s2 + $0xb0] sm:$0xf]
        %v491 = vld [vmem:[%s2 + $0xb4] sm:$0xf]
        %v492 = vld [vmem:[%s2 + $0xb8] sm:$0xf]
        %v493 = vld [vmem:[%s2 + $0xbc] sm:$0xf]
        %v494 = vld [vmem:[%s3] sm:$0x1]
        %v495 = vld [vmem:[%s3 + $0x1] sm:$0x1]
        %v496 = vld [vmem:[%s3 + $0x2] sm:$0x1]
        %v497 = vld [vmem:[%s3 + $0x3] sm:$0x1]
        %v498 = vld [vmem:[%s3 + $0x4] sm:$0x1]
        %v499 = vld [vmem:[%s3 + $0x5] sm:$0x1]
        %v500 = vld [vmem:[%s3 + $0x6] sm:$0x1]
        %v501 = vld [vmem:[%s3 + $0x7] sm:$0x1]
        %v502 = vld [vmem:[%s3 + $0x8] sm:$0x1]
        %v503 = vld [vmem:[%s3 + $0x9] sm:$0x1]
        %v504 = vld [vmem:[%s3 + $0xa] sm:$0x1]
        %v505 = vld [vmem:[%s3 + $0xb] sm:$0x1]
        %v518 = vlaneseq
        %v519 = vshrl.u32 %v518, 7
        %v520 = vsub.s32 0, %v519
        %v521 = vrot.slane %v494, %v520
        %v522 = vlaneseq
        %v523 = vshrl.u32 %v522, 7
        %v524 = vsub.s32 0, %v523
        %v525 = vrot.slane %v495, %v524
        %v526 = vlaneseq
        %v527 = vshrl.u32 %v526, 7
        %v528 = vsub.s32 0, %v527
        %v529 = vrot.slane %v496, %v528
        %v530 = vlaneseq
        %v531 = vshrl.u32 %v530, 7
        %v532 = vsub.s32 0, %v531
        %v533 = vrot.slane %v497, %v532
        %v534 = vlaneseq
        %v535 = vshrl.u32 %v534, 7
        %v536 = vsub.s32 0, %v535
        %v537 = vrot.slane %v498, %v536
        %v538 = vlaneseq
        %v539 = vshrl.u32 %v538, 7
        %v540 = vsub.s32 0, %v539
        %v541 = vrot.slane %v499, %v540
        %v542 = vlaneseq
        %v543 = vshrl.u32 %v542, 7
        %v544 = vsub.s32 0, %v543
        %v545 = vrot.slane %v500, %v544
        %v546 = vlaneseq
        %v547 = vshrl.u32 %v546, 7
        %v548 = vsub.s32 0, %v547
        %v549 = vrot.slane %v501, %v548
        %v550 = vlaneseq
        %v551 = vshrl.u32 %v550, 7
        %v552 = vsub.s32 0, %v551
        %v553 = vrot.slane %v502, %v552
        %v554 = vlaneseq
        %v555 = vshrl.u32 %v554, 7
        %v556 = vsub.s32 0, %v555
        %v557 = vrot.slane %v503, %v556
        %v558 = vlaneseq
        %v559 = vshrl.u32 %v558, 7
        %v560 = vsub.s32 0, %v559
        %v561 = vrot.slane %v504, %v560
        %v562 = vlaneseq
        %v563 = vshrl.u32 %v562, 7
        %v564 = vsub.s32 0, %v563
        %v565 = vrot.slane %v505, %v564
        %v582 = vunpack.c.l.b16 %v446
        %v583 = vunpack.c.l.b16 %v447
        %v584 = vunpack.c.l.b16 %v448
        %v585 = vunpack.c.l.b16 %v449
        %v586 = vpack.c.b16 %v583, %v582
        %v587 = vpack.c.b16 %v585, %v584
        %vm590 = vcmask 261120
        %v592 = vsel %vm590, %v445, 0
        %594 = vmatprep.subr.bf16.mxu0 0
        %595 = vmatpush1.bf16.msra.mxu0 %v586
        %596 = vmatprep.subr.bf16.mxu0 0
        %597 = vmatpush1.bf16.msra.mxu0 %v587
        %598 = vmatprep.subr.bf16.mxu0 0
        %599 = vmatpush1.bf16.msra.mxu0 0
        %600 = vmatprep.subr.bf16.mxu0 0
        %601 = vmatpush1.bf16.msra.mxu0 0
        %602 = vmatprep.subr.bf16.mxu0 0
        %603 = vmatpush1.bf16.msra.mxu0 0
        %604 = vmatprep.subr.bf16.mxu0 0
        %605 = vmatpush1.bf16.msra.mxu0 0
        %606 = vmatprep.subr.bf16.mxu0 0
        %607 = vmatpush1.bf16.msra.mxu0 0
        %608 = vmatprep.subr.bf16.mxu0 0
        %609 = vmatpush1.bf16.msra.mxu0 0
        %610 = vmatprep.subr.bf16.mxu0 0
        %611 = vmatpush1.bf16.msra.mxu0 0
        %612 = vmatprep.subr.bf16.mxu0 0
        %613 = vmatpush1.bf16.msra.mxu0 0
        %614 = vmatprep.subr.bf16.mxu0 0
        %615 = vmatpush1.bf16.msra.mxu0 0
        %616 = vmatprep.subr.bf16.mxu0 0
        %617 = vmatpush1.bf16.msra.mxu0 0
        %618 = vmatprep.subr.bf16.mxu0 0
        %619 = vmatpush1.bf16.msra.mxu0 0
        %620 = vmatprep.subr.bf16.mxu0 0
        %621 = vmatpush1.bf16.msra.mxu0 0
        %622 = vmatprep.subr.bf16.mxu0 0
        %623 = vmatpush1.bf16.msra.mxu0 0
        %624 = vmatprep.subr.bf16.mxu0 0
        %625 = vmatpush1.bf16.msra.mxu0 0
        %626 = vmatprep.mubr.bf16.mxu0 0
        %627 = vmatmul.mubr.bf16.gmra.mrb[0].mxu0 %v592
        %v628 = vpop.f32.mrb[0].mxu0
        %v629 = vadd.f32 %v521, %v628
        %v630 = vpop.f32.mrb[0].mxu0
        %v631 = vpop.f32.mrb[0].mxu0
        %v632 = vpop.f32.mrb[0].mxu0
        %633 = vdwg.mxu0
        %v638 = vunpack.c.l.b16 %v450
        %v639 = vunpack.c.l.b16 %v451
        %v640 = vunpack.c.l.b16 %v452
        %v641 = vunpack.c.l.b16 %v453
        %v642 = vpack.c.b16 %v639, %v638
        %v643 = vpack.c.b16 %v641, %v640
        %646 = vmatprep.subr.bf16.mxu0 0
        %647 = vmatpush1.bf16.msra.mxu0 %v642
        %648 = vmatprep.subr.bf16.mxu0 0
        %649 = vmatpush1.bf16.msra.mxu0 %v643
        %650 = vmatprep.subr.bf16.mxu0 0
        %651 = vmatpush1.bf16.msra.mxu0 0
        %652 = vmatprep.subr.bf16.mxu0 0
        %653 = vmatpush1.bf16.msra.mxu0 0
        %654 = vmatprep.subr.bf16.mxu0 0
        %655 = vmatpush1.bf16.msra.mxu0 0
        %656 = vmatprep.subr.bf16.mxu0 0
        %657 = vmatpush1.bf16.msra.mxu0 0
        %658 = vmatprep.subr.bf16.mxu0 0
        %659 = vmatpush1.bf16.msra.mxu0 0
        %660 = vmatprep.subr.bf16.mxu0 0
        %661 = vmatpush1.bf16.msra.mxu0 0
        %662 = vmatprep.subr.bf16.mxu0 0
        %663 = vmatpush1.bf16.msra.mxu0 0
        %664 = vmatprep.subr.bf16.mxu0 0
        %665 = vmatpush1.bf16.msra.mxu0 0
        %666 = vmatprep.subr.bf16.mxu0 0
        %667 = vmatpush1.bf16.msra.mxu0 0
        %668 = vmatprep.subr.bf16.mxu0 0
        %669 = vmatpush1.bf16.msra.mxu0 0
        %670 = vmatprep.subr.bf16.mxu0 0
        %671 = vmatpush1.bf16.msra.mxu0 0
        %672 = vmatprep.subr.bf16.mxu0 0
        %673 = vmatpush1.bf16.msra.mxu0 0
        %674 = vmatprep.subr.bf16.mxu0 0
        %675 = vmatpush1.bf16.msra.mxu0 0
        %676 = vmatprep.subr.bf16.mxu0 0
        %677 = vmatpush1.bf16.msra.mxu0 0
        %678 = vmatprep.mubr.bf16.mxu0 0
        %679 = vmatmul.mubr.bf16.gmra.mrb[0].mxu0 %v592
        %v680 = vpop.f32.mrb[0].mxu0
        %v681 = vadd.f32 %v525, %v680
        %v682 = vpop.f32.mrb[0].mxu0
        %v683 = vpop.f32.mrb[0].mxu0
        %v684 = vpop.f32.mrb[0].mxu0
        %685 = vdwg.mxu0
        %v690 = vunpack.c.l.b16 %v454
        %v691 = vunpack.c.l.b16 %v455
        %v692 = vunpack.c.l.b16 %v456
        %v693 = vunpack.c.l.b16 %v457
        %v694 = vpack.c.b16 %v691, %v690
        %v695 = vpack.c.b16 %v693, %v692
        %698 = vmatprep.subr.bf16.mxu0 0
        %699 = vmatpush1.bf16.msra.mxu0 %v694
        %700 = vmatprep.subr.bf16.mxu0 0
        %701 = vmatpush1.bf16.msra.mxu0 %v695
        %702 = vmatprep.subr.bf16.mxu0 0
        %703 = vmatpush1.bf16.msra.mxu0 0
        %704 = vmatprep.subr.bf16.mxu0 0
        %705 = vmatpush1.bf16.msra.mxu0 0
        %706 = vmatprep.subr.bf16.mxu0 0
        %707 = vmatpush1.bf16.msra.mxu0 0
        %708 = vmatprep.subr.bf16.mxu0 0
        %709 = vmatpush1.bf16.msra.mxu0 0
        %710 = vmatprep.subr.bf16.mxu0 0
        %711 = vmatpush1.bf16.msra.mxu0 0
        %712 = vmatprep.subr.bf16.mxu0 0
        %713 = vmatpush1.bf16.msra.mxu0 0
        %714 = vmatprep.subr.bf16.mxu0 0
        %715 = vmatpush1.bf16.msra.mxu0 0
        %716 = vmatprep.subr.bf16.mxu0 0
        %717 = vmatpush1.bf16.msra.mxu0 0
        %718 = vmatprep.subr.bf16.mxu0 0
        %719 = vmatpush1.bf16.msra.mxu0 0
        %720 = vmatprep.subr.bf16.mxu0 0
        %721 = vmatpush1.bf16.msra.mxu0 0
        %722 = vmatprep.subr.bf16.mxu0 0
        %723 = vmatpush1.bf16.msra.mxu0 0
        %724 = vmatprep.subr.bf16.mxu0 0
        %725 = vmatpush1.bf16.msra.mxu0 0
        %726 = vmatprep.subr.bf16.mxu0 0
        %727 = vmatpush1.bf16.msra.mxu0 0
        %728 = vmatprep.subr.bf16.mxu0 0
        %729 = vmatpush1.bf16.msra.mxu0 0
        %730 = vmatprep.mubr.bf16.mxu0 0
        %731 = vmatmul.mubr.bf16.gmra.mrb[0].mxu0 %v592
        %v732 = vpop.f32.mrb[0].mxu0
        %v733 = vadd.f32 %v529, %v732
        %v734 = vpop.f32.mrb[0].mxu0
        %v735 = vpop.f32.mrb[0].mxu0
        %v736 = vpop.f32.mrb[0].mxu0
        %737 = vdwg.mxu0
        %v742 = vunpack.c.l.b16 %v458
        %v743 = vunpack.c.l.b16 %v459
        %v744 = vunpack.c.l.b16 %v460
        %v745 = vunpack.c.l.b16 %v461
        %v746 = vpack.c.b16 %v743, %v742
        %v747 = vpack.c.b16 %v745, %v744
        %750 = vmatprep.subr.bf16.mxu0 0
        %751 = vmatpush1.bf16.msra.mxu0 %v746
        %752 = vmatprep.subr.bf16.mxu0 0
        %753 = vmatpush1.bf16.msra.mxu0 %v747
        %754 = vmatprep.subr.bf16.mxu0 0
        %755 = vmatpush1.bf16.msra.mxu0 0
        %756 = vmatprep.subr.bf16.mxu0 0
        %757 = vmatpush1.bf16.msra.mxu0 0
        %758 = vmatprep.subr.bf16.mxu0 0
        %759 = vmatpush1.bf16.msra.mxu0 0
        %760 = vmatprep.subr.bf16.mxu0 0
        %761 = vmatpush1.bf16.msra.mxu0 0
        %762 = vmatprep.subr.bf16.mxu0 0
        %763 = vmatpush1.bf16.msra.mxu0 0
        %764 = vmatprep.subr.bf16.mxu0 0
        %765 = vmatpush1.bf16.msra.mxu0 0
        %766 = vmatprep.subr.bf16.mxu0 0
        %767 = vmatpush1.bf16.msra.mxu0 0
        %768 = vmatprep.subr.bf16.mxu0 0
        %769 = vmatpush1.bf16.msra.mxu0 0
        %770 = vmatprep.subr.bf16.mxu0 0
        %771 = vmatpush1.bf16.msra.mxu0 0
        %772 = vmatprep.subr.bf16.mxu0 0
        %773 = vmatpush1.bf16.msra.mxu0 0
        %774 = vmatprep.subr.bf16.mxu0 0
        %775 = vmatpush1.bf16.msra.mxu0 0
        %776 = vmatprep.subr.bf16.mxu0 0
        %777 = vmatpush1.bf16.msra.mxu0 0
        %778 = vmatprep.subr.bf16.mxu0 0
        %779 = vmatpush1.bf16.msra.mxu0 0
        %780 = vmatprep.subr.bf16.mxu0 0
        %781 = vmatpush1.bf16.msra.mxu0 0
        %782 = vmatprep.mubr.bf16.mxu0 0
        %783 = vmatmul.mubr.bf16.gmra.mrb[0].mxu0 %v592
        %v784 = vpop.f32.mrb[0].mxu0
        %v785 = vadd.f32 %v533, %v784
        %v786 = vpop.f32.mrb[0].mxu0
        %v787 = vpop.f32.mrb[0].mxu0
        %v788 = vpop.f32.mrb[0].mxu0
        %789 = vdwg.mxu0
        %v794 = vunpack.c.l.b16 %v462
        %v795 = vunpack.c.l.b16 %v463
        %v796 = vunpack.c.l.b16 %v464
        %v797 = vunpack.c.l.b16 %v465
        %v798 = vpack.c.b16 %v795, %v794
        %v799 = vpack.c.b16 %v797, %v796
        %802 = vmatprep.subr.bf16.mxu0 0
        %803 = vmatpush1.bf16.msra.mxu0 %v798
        %804 = vmatprep.subr.bf16.mxu0 0
        %805 = vmatpush1.bf16.msra.mxu0 %v799
        %806 = vmatprep.subr.bf16.mxu0 0
        %807 = vmatpush1.bf16.msra.mxu0 0
        %808 = vmatprep.subr.bf16.mxu0 0
        %809 = vmatpush1.bf16.msra.mxu0 0
        %810 = vmatprep.subr.bf16.mxu0 0
        %811 = vmatpush1.bf16.msra.mxu0 0
        %812 = vmatprep.subr.bf16.mxu0 0
        %813 = vmatpush1.bf16.msra.mxu0 0
        %814 = vmatprep.subr.bf16.mxu0 0
        %815 = vmatpush1.bf16.msra.mxu0 0
        %816 = vmatprep.subr.bf16.mxu0 0
        %817 = vmatpush1.bf16.msra.mxu0 0
        %818 = vmatprep.subr.bf16.mxu0 0
        %819 = vmatpush1.bf16.msra.mxu0 0
        %820 = vmatprep.subr.bf16.mxu0 0
        %821 = vmatpush1.bf16.msra.mxu0 0
        %822 = vmatprep.subr.bf16.mxu0 0
        %823 = vmatpush1.bf16.msra.mxu0 0
        %824 = vmatprep.subr.bf16.mxu0 0
        %825 = vmatpush1.bf16.msra.mxu0 0
        %826 = vmatprep.subr.bf16.mxu0 0
        %827 = vmatpush1.bf16.msra.mxu0 0
        %828 = vmatprep.subr.bf16.mxu0 0
        %829 = vmatpush1.bf16.msra.mxu0 0
        %830 = vmatprep.subr.bf16.mxu0 0
        %831 = vmatpush1.bf16.msra.mxu0 0
        %832 = vmatprep.subr.bf16.mxu0 0
        %833 = vmatpush1.bf16.msra.mxu0 0
        %834 = vmatprep.mubr.bf16.mxu0 0
        %835 = vmatmul.mubr.bf16.gmra.mrb[0].mxu0 %v592
        %v836 = vpop.f32.mrb[0].mxu0
        %v837 = vadd.f32 %v537, %v836
        %v838 = vpop.f32.mrb[0].mxu0
        %v839 = vpop.f32.mrb[0].mxu0
        %v840 = vpop.f32.mrb[0].mxu0
        %841 = vdwg.mxu0
        %v846 = vunpack.c.l.b16 %v466
        %v847 = vunpack.c.l.b16 %v467
        %v848 = vunpack.c.l.b16 %v468
        %v849 = vunpack.c.l.b16 %v469
        %v850 = vpack.c.b16 %v847, %v846
        %v851 = vpack.c.b16 %v849, %v848
        %854 = vmatprep.subr.bf16.mxu0 0
        %855 = vmatpush1.bf16.msra.mxu0 %v850
        %856 = vmatprep.subr.bf16.mxu0 0
        %857 = vmatpush1.bf16.msra.mxu0 %v851
        %858 = vmatprep.subr.bf16.mxu0 0
        %859 = vmatpush1.bf16.msra.mxu0 0
        %860 = vmatprep.subr.bf16.mxu0 0
        %861 = vmatpush1.bf16.msra.mxu0 0
        %862 = vmatprep.subr.bf16.mxu0 0
        %863 = vmatpush1.bf16.msra.mxu0 0
        %864 = vmatprep.subr.bf16.mxu0 0
        %865 = vmatpush1.bf16.msra.mxu0 0
        %866 = vmatprep.subr.bf16.mxu0 0
        %867 = vmatpush1.bf16.msra.mxu0 0
        %868 = vmatprep.subr.bf16.mxu0 0
        %869 = vmatpush1.bf16.msra.mxu0 0
        %870 = vmatprep.subr.bf16.mxu0 0
        %871 = vmatpush1.bf16.msra.mxu0 0
        %872 = vmatprep.subr.bf16.mxu0 0
        %873 = vmatpush1.bf16.msra.mxu0 0
        %874 = vmatprep.subr.bf16.mxu0 0
        %875 = vmatpush1.bf16.msra.mxu0 0
        %876 = vmatprep.subr.bf16.mxu0 0
        %877 = vmatpush1.bf16.msra.mxu0 0
        %878 = vmatprep.subr.bf16.mxu0 0
        %879 = vmatpush1.bf16.msra.mxu0 0
        %880 = vmatprep.subr.bf16.mxu0 0
        %881 = vmatpush1.bf16.msra.mxu0 0
        %882 = vmatprep.subr.bf16.mxu0 0
        %883 = vmatpush1.bf16.msra.mxu0 0
        %884 = vmatprep.subr.bf16.mxu0 0
        %885 = vmatpush1.bf16.msra.mxu0 0
        %886 = vmatprep.mubr.bf16.mxu0 0
        %887 = vmatmul.mubr.bf16.gmra.mrb[0].mxu0 %v592
        %v888 = vpop.f32.mrb[0].mxu0
        %v889 = vadd.f32 %v541, %v888
        %v890 = vpop.f32.mrb[0].mxu0
        %v891 = vpop.f32.mrb[0].mxu0
        %v892 = vpop.f32.mrb[0].mxu0
        %893 = vdwg.mxu0
        %v898 = vunpack.c.l.b16 %v470
        %v899 = vunpack.c.l.b16 %v471
        %v900 = vunpack.c.l.b16 %v472
        %v901 = vunpack.c.l.b16 %v473
        %v902 = vpack.c.b16 %v899, %v898
        %v903 = vpack.c.b16 %v901, %v900
        %906 = vmatprep.subr.bf16.mxu0 0
        %907 = vmatpush1.bf16.msra.mxu0 %v902
        %908 = vmatprep.subr.bf16.mxu0 0
        %909 = vmatpush1.bf16.msra.mxu0 %v903
        %910 = vmatprep.subr.bf16.mxu0 0
        %911 = vmatpush1.bf16.msra.mxu0 0
        %912 = vmatprep.subr.bf16.mxu0 0
        %913 = vmatpush1.bf16.msra.mxu0 0
        %914 = vmatprep.subr.bf16.mxu0 0
        %915 = vmatpush1.bf16.msra.mxu0 0
        %916 = vmatprep.subr.bf16.mxu0 0
        %917 = vmatpush1.bf16.msra.mxu0 0
        %918 = vmatprep.subr.bf16.mxu0 0
        %919 = vmatpush1.bf16.msra.mxu0 0
        %920 = vmatprep.subr.bf16.mxu0 0
        %921 = vmatpush1.bf16.msra.mxu0 0
        %922 = vmatprep.subr.bf16.mxu0 0
        %923 = vmatpush1.bf16.msra.mxu0 0
        %924 = vmatprep.subr.bf16.mxu0 0
        %925 = vmatpush1.bf16.msra.mxu0 0
        %926 = vmatprep.subr.bf16.mxu0 0
        %927 = vmatpush1.bf16.msra.mxu0 0
        %928 = vmatprep.subr.bf16.mxu0 0
        %929 = vmatpush1.bf16.msra.mxu0 0
        %930 = vmatprep.subr.bf16.mxu0 0
        %931 = vmatpush1.bf16.msra.mxu0 0
        %932 = vmatprep.subr.bf16.mxu0 0
        %933 = vmatpush1.bf16.msra.mxu0 0
        %934 = vmatprep.subr.bf16.mxu0 0
        %935 = vmatpush1.bf16.msra.mxu0 0
        %936 = vmatprep.subr.bf16.mxu0 0
        %937 = vmatpush1.bf16.msra.mxu0 0
        %938 = vmatprep.mubr.bf16.mxu0 0
        %939 = vmatmul.mubr.bf16.gmra.mrb[0].mxu0 %v592
        %v940 = vpop.f32.mrb[0].mxu0
        %v941 = vadd.f32 %v545, %v940
        %v942 = vpop.f32.mrb[0].mxu0
        %v943 = vpop.f32.mrb[0].mxu0
        %v944 = vpop.f32.mrb[0].mxu0
        %945 = vdwg.mxu0
        %v950 = vunpack.c.l.b16 %v474
        %v951 = vunpack.c.l.b16 %v475
        %v952 = vunpack.c.l.b16 %v476
        %v953 = vunpack.c.l.b16 %v477
        %v954 = vpack.c.b16 %v951, %v950
        %v955 = vpack.c.b16 %v953, %v952
        %958 = vmatprep.subr.bf16.mxu0 0
        %959 = vmatpush1.bf16.msra.mxu0 %v954
        %960 = vmatprep.subr.bf16.mxu0 0
        %961 = vmatpush1.bf16.msra.mxu0 %v955
        %962 = vmatprep.subr.bf16.mxu0 0
        %963 = vmatpush1.bf16.msra.mxu0 0
        %964 = vmatprep.subr.bf16.mxu0 0
        %965 = vmatpush1.bf16.msra.mxu0 0
        %966 = vmatprep.subr.bf16.mxu0 0
        %967 = vmatpush1.bf16.msra.mxu0 0
        %968 = vmatprep.subr.bf16.mxu0 0
        %969 = vmatpush1.bf16.msra.mxu0 0
        %970 = vmatprep.subr.bf16.mxu0 0
        %971 = vmatpush1.bf16.msra.mxu0 0
        %972 = vmatprep.subr.bf16.mxu0 0
        %973 = vmatpush1.bf16.msra.mxu0 0
        %974 = vmatprep.subr.bf16.mxu0 0
        %975 = vmatpush1.bf16.msra.mxu0 0
        %976 = vmatprep.subr.bf16.mxu0 0
        %977 = vmatpush1.bf16.msra.mxu0 0
        %978 = vmatprep.subr.bf16.mxu0 0
        %979 = vmatpush1.bf16.msra.mxu0 0
        %980 = vmatprep.subr.bf16.mxu0 0
        %981 = vmatpush1.bf16.msra.mxu0 0
        %982 = vmatprep.subr.bf16.mxu0 0
        %983 = vmatpush1.bf16.msra.mxu0 0
        %984 = vmatprep.subr.bf16.mxu0 0
        %985 = vmatpush1.bf16.msra.mxu0 0
        %986 = vmatprep.subr.bf16.mxu0 0
        %987 = vmatpush1.bf16.msra.mxu0 0
        %988 = vmatprep.subr.bf16.mxu0 0
        %989 = vmatpush1.bf16.msra.mxu0 0
        %990 = vmatprep.mubr.bf16.mxu0 0
        %991 = vmatmul.mubr.bf16.gmra.mrb[0].mxu0 %v592
        %v992 = vpop.f32.mrb[0].mxu0
        %v993 = vadd.f32 %v549, %v992
        %v994 = vpop.f32.mrb[0].mxu0
        %v995 = vpop.f32.mrb[0].mxu0
        %v996 = vpop.f32.mrb[0].mxu0
        %997 = vdwg.mxu0
        %v1002 = vunpack.c.l.b16 %v478
        %v1003 = vunpack.c.l.b16 %v479
        %v1004 = vunpack.c.l.b16 %v480
        %v1005 = vunpack.c.l.b16 %v481
        %v1006 = vpack.c.b16 %v1003, %v1002
        %v1007 = vpack.c.b16 %v1005, %v1004
        %1010 = vmatprep.subr.bf16.mxu0 0
        %1011 = vmatpush1.bf16.msra.mxu0 %v1006
        %1012 = vmatprep.subr.bf16.mxu0 0
        %1013 = vmatpush1.bf16.msra.mxu0 %v1007
        %1014 = vmatprep.subr.bf16.mxu0 0
        %1015 = vmatpush1.bf16.msra.mxu0 0
        %1016 = vmatprep.subr.bf16.mxu0 0
        %1017 = vmatpush1.bf16.msra.mxu0 0
        %1018 = vmatprep.subr.bf16.mxu0 0
        %1019 = vmatpush1.bf16.msra.mxu0 0
        %1020 = vmatprep.subr.bf16.mxu0 0
        %1021 = vmatpush1.bf16.msra.mxu0 0
        %1022 = vmatprep.subr.bf16.mxu0 0
        %1023 = vmatpush1.bf16.msra.mxu0 0
        %1024 = vmatprep.subr.bf16.mxu0 0
        %1025 = vmatpush1.bf16.msra.mxu0 0
        %1026 = vmatprep.subr.bf16.mxu0 0
        %1027 = vmatpush1.bf16.msra.mxu0 0
        %1028 = vmatprep.subr.bf16.mxu0 0
        %1029 = vmatpush1.bf16.msra.mxu0 0
        %1030 = vmatprep.subr.bf16.mxu0 0
        %1031 = vmatpush1.bf16.msra.mxu0 0
        %1032 = vmatprep.subr.bf16.mxu0 0
        %1033 = vmatpush1.bf16.msra.mxu0 0
        %1034 = vmatprep.subr.bf16.mxu0 0
        %1035 = vmatpush1.bf16.msra.mxu0 0
        %1036 = vmatprep.subr.bf16.mxu0 0
        %1037 = vmatpush1.bf16.msra.mxu0 0
        %1038 = vmatprep.subr.bf16.mxu0 0
        %1039 = vmatpush1.bf16.msra.mxu0 0
        %1040 = vmatprep.subr.bf16.mxu0 0
        %1041 = vmatpush1.bf16.msra.mxu0 0
        %1042 = vmatprep.mubr.bf16.mxu0 0
        %1043 = vmatmul.mubr.bf16.gmra.mrb[0].mxu0 %v592
        %v1044 = vpop.f32.mrb[0].mxu0
        %v1045 = vadd.f32 %v553, %v1044
        %v1046 = vpop.f32.mrb[0].mxu0
        %v1047 = vpop.f32.mrb[0].mxu0
        %v1048 = vpop.f32.mrb[0].mxu0
        %1049 = vdwg.mxu0
        %v1054 = vunpack.c.l.b16 %v482
        %v1055 = vunpack.c.l.b16 %v483
        %v1056 = vunpack.c.l.b16 %v484
        %v1057 = vunpack.c.l.b16 %v485
        %v1058 = vpack.c.b16 %v1055, %v1054
        %v1059 = vpack.c.b16 %v1057, %v1056
        %1062 = vmatprep.subr.bf16.mxu0 0
        %1063 = vmatpush1.bf16.msra.mxu0 %v1058
        %1064 = vmatprep.subr.bf16.mxu0 0
        %1065 = vmatpush1.bf16.msra.mxu0 %v1059
        %1066 = vmatprep.subr.bf16.mxu0 0
        %1067 = vmatpush1.bf16.msra.mxu0 0
        %1068 = vmatprep.subr.bf16.mxu0 0
        %1069 = vmatpush1.bf16.msra.mxu0 0
        %1070 = vmatprep.subr.bf16.mxu0 0
        %1071 = vmatpush1.bf16.msra.mxu0 0
        %1072 = vmatprep.subr.bf16.mxu0 0
        %1073 = vmatpush1.bf16.msra.mxu0 0
        %1074 = vmatprep.subr.bf16.mxu0 0
        %1075 = vmatpush1.bf16.msra.mxu0 0
        %1076 = vmatprep.subr.bf16.mxu0 0
        %1077 = vmatpush1.bf16.msra.mxu0 0
        %1078 = vmatprep.subr.bf16.mxu0 0
        %1079 = vmatpush1.bf16.msra.mxu0 0
        %1080 = vmatprep.subr.bf16.mxu0 0
        %1081 = vmatpush1.bf16.msra.mxu0 0
        %1082 = vmatprep.subr.bf16.mxu0 0
        %1083 = vmatpush1.bf16.msra.mxu0 0
        %1084 = vmatprep.subr.bf16.mxu0 0
        %1085 = vmatpush1.bf16.msra.mxu0 0
        %1086 = vmatprep.subr.bf16.mxu0 0
        %1087 = vmatpush1.bf16.msra.mxu0 0
        %1088 = vmatprep.subr.bf16.mxu0 0
        %1089 = vmatpush1.bf16.msra.mxu0 0
        %1090 = vmatprep.subr.bf16.mxu0 0
        %1091 = vmatpush1.bf16.msra.mxu0 0
        %1092 = vmatprep.subr.bf16.mxu0 0
        %1093 = vmatpush1.bf16.msra.mxu0 0
        %1094 = vmatprep.mubr.bf16.mxu0 0
        %1095 = vmatmul.mubr.bf16.gmra.mrb[0].mxu0 %v592
        %v1096 = vpop.f32.mrb[0].mxu0
        %v1097 = vadd.f32 %v557, %v1096
        %v1098 = vpop.f32.mrb[0].mxu0
        %v1099 = vpop.f32.mrb[0].mxu0
        %v1100 = vpop.f32.mrb[0].mxu0
        %1101 = vdwg.mxu0
        %v1106 = vunpack.c.l.b16 %v486
        %v1107 = vunpack.c.l.b16 %v487
        %v1108 = vunpack.c.l.b16 %v488
        %v1109 = vunpack.c.l.b16 %v489
        %v1110 = vpack.c.b16 %v1107, %v1106
        %v1111 = vpack.c.b16 %v1109, %v1108
        %1114 = vmatprep.subr.bf16.mxu0 0
        %1115 = vmatpush1.bf16.msra.mxu0 %v1110
        %1116 = vmatprep.subr.bf16.mxu0 0
        %1117 = vmatpush1.bf16.msra.mxu0 %v1111
        %1118 = vmatprep.subr.bf16.mxu0 0
        %1119 = vmatpush1.bf16.msra.mxu0 0
        %1120 = vmatprep.subr.bf16.mxu0 0
        %1121 = vmatpush1.bf16.msra.mxu0 0
        %1122 = vmatprep.subr.bf16.mxu0 0
        %1123 = vmatpush1.bf16.msra.mxu0 0
        %1124 = vmatprep.subr.bf16.mxu0 0
        %1125 = vmatpush1.bf16.msra.mxu0 0
        %1126 = vmatprep.subr.bf16.mxu0 0
        %1127 = vmatpush1.bf16.msra.mxu0 0
        %1128 = vmatprep.subr.bf16.mxu0 0
        %1129 = vmatpush1.bf16.msra.mxu0 0
        %1130 = vmatprep.subr.bf16.mxu0 0
        %1131 = vmatpush1.bf16.msra.mxu0 0
        %1132 = vmatprep.subr.bf16.mxu0 0
        %1133 = vmatpush1.bf16.msra.mxu0 0
        %1134 = vmatprep.subr.bf16.mxu0 0
        %1135 = vmatpush1.bf16.msra.mxu0 0
        %1136 = vmatprep.subr.bf16.mxu0 0
        %1137 = vmatpush1.bf16.msra.mxu0 0
        %1138 = vmatprep.subr.bf16.mxu0 0
        %1139 = vmatpush1.bf16.msra.mxu0 0
        %1140 = vmatprep.subr.bf16.mxu0 0
        %1141 = vmatpush1.bf16.msra.mxu0 0
        %1142 = vmatprep.subr.bf16.mxu0 0
        %1143 = vmatpush1.bf16.msra.mxu0 0
        %1144 = vmatprep.subr.bf16.mxu0 0
        %1145 = vmatpush1.bf16.msra.mxu0 0
        %1146 = vmatprep.mubr.bf16.mxu0 0
        %1147 = vmatmul.mubr.bf16.gmra.mrb[0].mxu0 %v592
        %v1148 = vpop.f32.mrb[0].mxu0
        %v1149 = vadd.f32 %v561, %v1148
        %v1150 = vpop.f32.mrb[0].mxu0
        %v1151 = vpop.f32.mrb[0].mxu0
        %v1152 = vpop.f32.mrb[0].mxu0
        %1153 = vdwg.mxu0
        %v1158 = vunpack.c.l.b16 %v490
        %v1159 = vunpack.c.l.b16 %v491
        %v1160 = vunpack.c.l.b16 %v492
        %v1161 = vunpack.c.l.b16 %v493
        %v1162 = vpack.c.b16 %v1159, %v1158
        %v1163 = vpack.c.b16 %v1161, %v1160
        %1166 = vmatprep.subr.bf16.mxu0 0
        %1167 = vmatpush1.bf16.msra.mxu0 %v1162
        %1168 = vmatprep.subr.bf16.mxu0 0
        %1169 = vmatpush1.bf16.msra.mxu0 %v1163
        %1170 = vmatprep.subr.bf16.mxu0 0
        %1171 = vmatpush1.bf16.msra.mxu0 0
        %1172 = vmatprep.subr.bf16.mxu0 0
        %1173 = vmatpush1.bf16.msra.mxu0 0
        %1174 = vmatprep.subr.bf16.mxu0 0
        %1175 = vmatpush1.bf16.msra.mxu0 0
        %1176 = vmatprep.subr.bf16.mxu0 0
        %1177 = vmatpush1.bf16.msra.mxu0 0
        %1178 = vmatprep.subr.bf16.mxu0 0
        %1179 = vmatpush1.bf16.msra.mxu0 0
        %1180 = vmatprep.subr.bf16.mxu0 0
        %1181 = vmatpush1.bf16.msra.mxu0 0
        %1182 = vmatprep.subr.bf16.mxu0 0
        %1183 = vmatpush1.bf16.msra.mxu0 0
        %1184 = vmatprep.subr.bf16.mxu0 0
        %1185 = vmatpush1.bf16.msra.mxu0 0
        %1186 = vmatprep.subr.bf16.mxu0 0
        %1187 = vmatpush1.bf16.msra.mxu0 0
        %1188 = vmatprep.subr.bf16.mxu0 0
        %1189 = vmatpush1.bf16.msra.mxu0 0
        %1190 = vmatprep.subr.bf16.mxu0 0
        %1191 = vmatpush1.bf16.msra.mxu0 0
        %1192 = vmatprep.subr.bf16.mxu0 0
        %1193 = vmatpush1.bf16.msra.mxu0 0
        %1194 = vmatprep.subr.bf16.mxu0 0
        %1195 = vmatpush1.bf16.msra.mxu0 0
        %1196 = vmatprep.subr.bf16.mxu0 0
        %1197 = vmatpush1.bf16.msra.mxu0 0
        %1198 = vmatprep.mubr.bf16.mxu0 0
        %1199 = vmatmul.mubr.bf16.gmra.mrb[0].mxu0 %v592
        %v1200 = vpop.f32.mrb[0].mxu0
        %v1201 = vadd.f32 %v565, %v1200
        %v1202 = vpop.f32.mrb[0].mxu0
        %v1203 = vpop.f32.mrb[0].mxu0
        %v1204 = vpop.f32.mrb[0].mxu0
        %1205 = vdwg.mxu0
        %v1206 = vpack.c.bf16 %v629, %v629
        %v1207 = vpack.c.bf16 %v681, %v681
        %v1208 = vpack.c.bf16 %v733, %v733
        %v1209 = vpack.c.bf16 %v785, %v785
        %v1210 = vpack.c.bf16 %v837, %v837
        %v1211 = vpack.c.bf16 %v889, %v889
        %v1212 = vpack.c.bf16 %v941, %v941
        %v1213 = vpack.c.bf16 %v993, %v993
        %vm1214 = vcmask 64512
        %v1216 = vsel %vm1214, %v1206, 0
        %v1219 = vsel %vm1214, %v1210, 0
        %1221 = vmatprep.subr.bf16.mxu0 0
        %1222 = vmatpush1.bf16.xpose.msra.mxu0 %v1219
        %1223 = vmatprep.subr.bf16.mxu0 0
        %1224 = vmatpush1.bf16.xpose.msra.mxu0 0
        %1225 = vmatprep.subr.bf16.mxu0 0
        %1226 = vmatpush1.bf16.xpose.msra.mxu0 0
        %1227 = vmatprep.subr.bf16.mxu0 0
        %1228 = vmatpush1.bf16.xpose.msra.mxu0 0
        %1229 = vmatprep.subr.bf16.mxu0 0
        %1230 = vmatpush1.bf16.xpose.msra.mxu0 0
        %1231 = vmatprep.subr.bf16.mxu0 0
        %1232 = vmatpush1.bf16.xpose.msra.mxu0 0
        %1233 = vmatprep.subr.bf16.mxu0 0
        %1234 = vmatpush1.bf16.xpose.msra.mxu0 0
        %1235 = vmatprep.subr.bf16.mxu0 0
        %1236 = vmatpush1.bf16.xpose.msra.mxu0 0
        %1237 = vmatprep.subr.bf16.mxu0 0
        %1238 = vmatpush1.bf16.xpose.msra.mxu0 0
        %1239 = vmatprep.subr.bf16.mxu0 0
        %1240 = vmatpush1.bf16.xpose.msra.mxu0 0
        %1241 = vmatprep.subr.bf16.mxu0 0
        %1242 = vmatpush1.bf16.xpose.msra.mxu0 0
        %1243 = vmatprep.subr.bf16.mxu0 0
        %1244 = vmatpush1.bf16.xpose.msra.mxu0 0
        %1245 = vmatprep.subr.bf16.mxu0 0
        %1246 = vmatpush1.bf16.xpose.msra.mxu0 0
        %1247 = vmatprep.subr.bf16.mxu0 0
        %1248 = vmatpush1.bf16.xpose.msra.mxu0 0
        %1249 = vmatprep.subr.bf16.mxu0 0
        %1250 = vmatpush1.bf16.xpose.msra.mxu0 0
        %1251 = vmatprep.subr.bf16.mxu0 0
        %1252 = vmatpush1.bf16.xpose.msra.mxu0 0
        %1253 = vmatprep.mubr.bf16.mxu0 0
        %1254 = vmatmul.mubr.bf16.gmra.mrb[0].mxu0 %v1216
        %v1255 = vpop.f32.mrb[0].mxu0
        %v1256 = vadd.f32 0.0, %v1255
        %v1257 = vpop.f32.mrb[0].mxu0
        %v1258 = vpop.f32.mrb[0].mxu0
        %v1259 = vpop.f32.mrb[0].mxu0
        %1260 = vdwg.mxu0
        %v1262 = vsel %vm1214, %v1207, 0
        %v1265 = vsel %vm1214, %v1211, 0
        %1267 = vmatprep.subr.bf16.mxu0 0
        %1268 = vmatpush1.bf16.xpose.msra.mxu0 %v1265
        %1269 = vmatprep.subr.bf16.mxu0 0
        %1270 = vmatpush1.bf16.xpose.msra.mxu0 0
        %1271 = vmatprep.subr.bf16.mxu0 0
        %1272 = vmatpush1.bf16.xpose.msra.mxu0 0
        %1273 = vmatprep.subr.bf16.mxu0 0
        %1274 = vmatpush1.bf16.xpose.msra.mxu0 0
        %1275 = vmatprep.subr.bf16.mxu0 0
        %1276 = vmatpush1.bf16.xpose.msra.mxu0 0
        %1277 = vmatprep.subr.bf16.mxu0 0
        %1278 = vmatpush1.bf16.xpose.msra.mxu0 0
        %1279 = vmatprep.subr.bf16.mxu0 0
        %1280 = vmatpush1.bf16.xpose.msra.mxu0 0
        %1281 = vmatprep.subr.bf16.mxu0 0
        %1282 = vmatpush1.bf16.xpose.msra.mxu0 0
        %1283 = vmatprep.subr.bf16.mxu0 0
        %1284 = vmatpush1.bf16.xpose.msra.mxu0 0
        %1285 = vmatprep.subr.bf16.mxu0 0
        %1286 = vmatpush1.bf16.xpose.msra.mxu0 0
        %1287 = vmatprep.subr.bf16.mxu0 0
        %1288 = vmatpush1.bf16.xpose.msra.mxu0 0
        %1289 = vmatprep.subr.bf16.mxu0 0
        %1290 = vmatpush1.bf16.xpose.msra.mxu0 0
        %1291 = vmatprep.subr.bf16.mxu0 0
        %1292 = vmatpush1.bf16.xpose.msra.mxu0 0
        %1293 = vmatprep.subr.bf16.mxu0 0
        %1294 = vmatpush1.bf16.xpose.msra.mxu0 0
        %1295 = vmatprep.subr.bf16.mxu0 0
        %1296 = vmatpush1.bf16.xpose.msra.mxu0 0
        %1297 = vmatprep.subr.bf16.mxu0 0
        %1298 = vmatpush1.bf16.xpose.msra.mxu0 0
        %1299 = vmatprep.mubr.bf16.mxu0 0
        %1300 = vmatmul.mubr.bf16.gmra.mrb[0].mxu0 %v1262
        %v1301 = vpop.f32.mrb[0].mxu0
        %v1302 = vadd.f32 0.0, %v1301
        %v1303 = vpop.f32.mrb[0].mxu0
        %v1304 = vpop.f32.mrb[0].mxu0
        %v1305 = vpop.f32.mrb[0].mxu0
        %1306 = vdwg.mxu0
        %v1308 = vsel %vm1214, %v1208, 0
        %v1311 = vsel %vm1214, %v1212, 0
        %1313 = vmatprep.subr.bf16.mxu0 0
        %1314 = vmatpush1.bf16.xpose.msra.mxu0 %v1311
        %1315 = vmatprep.subr.bf16.mxu0 0
        %1316 = vmatpush1.bf16.xpose.msra.mxu0 0
        %1317 = vmatprep.subr.bf16.mxu0 0
        %1318 = vmatpush1.bf16.xpose.msra.mxu0 0
        %1319 = vmatprep.subr.bf16.mxu0 0
        %1320 = vmatpush1.bf16.xpose.msra.mxu0 0
        %1321 = vmatprep.subr.bf16.mxu0 0
        %1322 = vmatpush1.bf16.xpose.msra.mxu0 0
        %1323 = vmatprep.subr.bf16.mxu0 0
        %1324 = vmatpush1.bf16.xpose.msra.mxu0 0
        %1325 = vmatprep.subr.bf16.mxu0 0
        %1326 = vmatpush1.bf16.xpose.msra.mxu0 0
        %1327 = vmatprep.subr.bf16.mxu0 0
        %1328 = vmatpush1.bf16.xpose.msra.mxu0 0
        %1329 = vmatprep.subr.bf16.mxu0 0
        %1330 = vmatpush1.bf16.xpose.msra.mxu0 0
        %1331 = vmatprep.subr.bf16.mxu0 0
        %1332 = vmatpush1.bf16.xpose.msra.mxu0 0
        %1333 = vmatprep.subr.bf16.mxu0 0
        %1334 = vmatpush1.bf16.xpose.msra.mxu0 0
        %1335 = vmatprep.subr.bf16.mxu0 0
        %1336 = vmatpush1.bf16.xpose.msra.mxu0 0
        %1337 = vmatprep.subr.bf16.mxu0 0
        %1338 = vmatpush1.bf16.xpose.msra.mxu0 0
        %1339 = vmatprep.subr.bf16.mxu0 0
        %1340 = vmatpush1.bf16.xpose.msra.mxu0 0
        %1341 = vmatprep.subr.bf16.mxu0 0
        %1342 = vmatpush1.bf16.xpose.msra.mxu0 0
        %1343 = vmatprep.subr.bf16.mxu0 0
        %1344 = vmatpush1.bf16.xpose.msra.mxu0 0
        %1345 = vmatprep.mubr.bf16.mxu0 0
        %1346 = vmatmul.mubr.bf16.gmra.mrb[0].mxu0 %v1308
        %v1347 = vpop.f32.mrb[0].mxu0
        %v1348 = vadd.f32 0.0, %v1347
        %v1349 = vpop.f32.mrb[0].mxu0
        %v1350 = vpop.f32.mrb[0].mxu0
        %v1351 = vpop.f32.mrb[0].mxu0
        %1352 = vdwg.mxu0
        %v1354 = vsel %vm1214, %v1209, 0
        %v1357 = vsel %vm1214, %v1213, 0
        %1359 = vmatprep.subr.bf16.mxu0 0
        %1360 = vmatpush1.bf16.xpose.msra.mxu0 %v1357
        %1361 = vmatprep.subr.bf16.mxu0 0
        %1362 = vmatpush1.bf16.xpose.msra.mxu0 0
        %1363 = vmatprep.subr.bf16.mxu0 0
        %1364 = vmatpush1.bf16.xpose.msra.mxu0 0
        %1365 = vmatprep.subr.bf16.mxu0 0
        %1366 = vmatpush1.bf16.xpose.msra.mxu0 0
        %1367 = vmatprep.subr.bf16.mxu0 0
        %1368 = vmatpush1.bf16.xpose.msra.mxu0 0
        %1369 = vmatprep.subr.bf16.mxu0 0
        %1370 = vmatpush1.bf16.xpose.msra.mxu0 0
        %1371 = vmatprep.subr.bf16.mxu0 0
        %1372 = vmatpush1.bf16.xpose.msra.mxu0 0
        %1373 = vmatprep.subr.bf16.mxu0 0
        %1374 = vmatpush1.bf16.xpose.msra.mxu0 0
        %1375 = vmatprep.subr.bf16.mxu0 0
        %1376 = vmatpush1.bf16.xpose.msra.mxu0 0
        %1377 = vmatprep.subr.bf16.mxu0 0
        %1378 = vmatpush1.bf16.xpose.msra.mxu0 0
        %1379 = vmatprep.subr.bf16.mxu0 0
        %1380 = vmatpush1.bf16.xpose.msra.mxu0 0
        %1381 = vmatprep.subr.bf16.mxu0 0
        %1382 = vmatpush1.bf16.xpose.msra.mxu0 0
        %1383 = vmatprep.subr.bf16.mxu0 0
        %1384 = vmatpush1.bf16.xpose.msra.mxu0 0
        %1385 = vmatprep.subr.bf16.mxu0 0
        %1386 = vmatpush1.bf16.xpose.msra.mxu0 0
        %1387 = vmatprep.subr.bf16.mxu0 0
        %1388 = vmatpush1.bf16.xpose.msra.mxu0 0
        %1389 = vmatprep.subr.bf16.mxu0 0
        %1390 = vmatpush1.bf16.xpose.msra.mxu0 0
        %1391 = vmatprep.mubr.bf16.mxu0 0
        %1392 = vmatmul.mubr.bf16.gmra.mrb[0].mxu0 %v1354
        %v1393 = vpop.f32.mrb[0].mxu0
        %v1394 = vadd.f32 0.0, %v1393
        %v1395 = vpop.f32.mrb[0].mxu0
        %v1396 = vpop.f32.mrb[0].mxu0
        %v1397 = vpop.f32.mrb[0].mxu0
        %1398 = vdwg.mxu0
        %s1399 = sld [smem:[#allocation3 + %s34]]
        %v1400 = vlaneseq
        %v1401 = vand.u32 %v1400, 127
        %v1402 = vstv %s1399
        %vm1403 = vcmp.lt.s32.totalorder %v1401, %v1402
        %v1404 = vsel %vm1403, 1e+30, -1000000.0
        %v1405 = vmin.f32 %v1256, %v1404
        %v1406 = vmin.f32 %v1302, %v1404
        %v1407 = vmin.f32 %v1348, %v1404
        %v1408 = vmin.f32 %v1394, %v1404
        %v1409 = vsel %vm1214, %v1405, -inf
        %1410 = vmax.xlane.f32.xlu0 %v1409
        %v1411 = vpop.xlane.xlu0 %1410
        %v1412 = vsel %vm1214, %v1406, -inf
        %1413 = vmax.xlane.f32.xlu0 %v1412
        %v1414 = vpop.xlane.xlu0 %1413
        %v1415 = vsel %vm1214, %v1407, -inf
        %1416 = vmax.xlane.f32.xlu0 %v1415
        %v1417 = vpop.xlane.xlu0 %1416
        %v1418 = vsel %vm1214, %v1408, -inf
        %1419 = vmax.xlane.f32.xlu0 %v1418
        %v1420 = vpop.xlane.xlu0 %1419
        %v1421 = vsub.f32 %v1405, %v1411
        %v1422 = vsub.f32 %v1406, %v1414
        %v1423 = vsub.f32 %v1407, %v1417
        %v1424 = vsub.f32 %v1408, %v1420
        %v1425 = vmul.f32 %v1421, 1.442695
        %v1426 = vpow.pop %v1425
        %v1427 = vmul.f32 %v1422, 1.442695
        %v1428 = vpow.pop %v1427
        %v1429 = vmul.f32 %v1423, 1.442695
        %v1430 = vpow.pop %v1429
        %v1431 = vmul.f32 %v1424, 1.442695
        %v1432 = vpow.pop %v1431
        %v1433 = vsel %vm1214, %v1426, 0.0
        %1434 = vadd.xlane.f32.xlu0 %v1433
        %v1435 = vpop.xlane.xlu0 %1434
        %v1436 = vsel %vm1214, %v1428, 0.0
        %1437 = vadd.xlane.f32.xlu0 %v1436
        %v1438 = vpop.xlane.xlu0 %1437
        %v1439 = vsel %vm1214, %v1430, 0.0
        %1440 = vadd.xlane.f32.xlu0 %v1439
        %v1441 = vpop.xlane.xlu0 %1440
        %v1442 = vsel %vm1214, %v1432, 0.0
        %1443 = vadd.xlane.f32.xlu0 %v1442
        %v1444 = vpop.xlane.xlu0 %1443
        %v1445 = vrcp.pop %v1435
        %v1446 = vrcp.pop %v1438
        %v1447 = vrcp.pop %v1441
        %v1448 = vrcp.pop %v1444
        %v1449 = vmul.f32 %v1426, %v1445
        %v1450 = vmul.f32 %v1428, %v1446
        %v1451 = vmul.f32 %v1430, %v1447
        %v1452 = vmul.f32 %v1432, %v1448
        %v1453 = vpack.c.bf16 %v1449, %v1449
        %v1454 = vpack.c.bf16 %v1450, %v1450
        %v1455 = vpack.c.bf16 %v1451, %v1451
        %v1456 = vpack.c.bf16 %v1452, %v1452
        %v1457 = vpack.c.bf16 %v1045, %v1045
        %v1458 = vpack.c.bf16 %v1097, %v1097
        %v1459 = vpack.c.bf16 %v1149, %v1149
        %v1460 = vpack.c.bf16 %v1201, %v1201
        %v1462 = vsel %vm1214, %v1453, 0
        %vm1464 = vcmask 1043456
        %v1466 = vsel %vm1464, %v1457, 0
        %1468 = vmatprep.subr.bf16.mxu0 0
        %1469 = vmatpush1.bf16.msra.mxu0 %v1466
        %1470 = vmatprep.subr.bf16.mxu0 0
        %1471 = vmatpush1.bf16.msra.mxu0 0
        %1472 = vmatprep.subr.bf16.mxu0 0
        %1473 = vmatpush1.bf16.msra.mxu0 0
        %1474 = vmatprep.subr.bf16.mxu0 0
        %1475 = vmatpush1.bf16.msra.mxu0 0
        %1476 = vmatprep.subr.bf16.mxu0 0
        %1477 = vmatpush1.bf16.msra.mxu0 0
        %1478 = vmatprep.subr.bf16.mxu0 0
        %1479 = vmatpush1.bf16.msra.mxu0 0
        %1480 = vmatprep.subr.bf16.mxu0 0
        %1481 = vmatpush1.bf16.msra.mxu0 0
        %1482 = vmatprep.subr.bf16.mxu0 0
        %1483 = vmatpush1.bf16.msra.mxu0 0
        %1484 = vmatprep.subr.bf16.mxu0 0
        %1485 = vmatpush1.bf16.msra.mxu0 0
        %1486 = vmatprep.subr.bf16.mxu0 0
        %1487 = vmatpush1.bf16.msra.mxu0 0
        %1488 = vmatprep.subr.bf16.mxu0 0
        %1489 = vmatpush1.bf16.msra.mxu0 0
        %1490 = vmatprep.subr.bf16.mxu0 0
        %1491 = vmatpush1.bf16.msra.mxu0 0
        %1492 = vmatprep.subr.bf16.mxu0 0
        %1493 = vmatpush1.bf16.msra.mxu0 0
        %1494 = vmatprep.subr.bf16.mxu0 0
        %1495 = vmatpush1.bf16.msra.mxu0 0
        %1496 = vmatprep.subr.bf16.mxu0 0
        %1497 = vmatpush1.bf16.msra.mxu0 0
        %1498 = vmatprep.subr.bf16.mxu0 0
        %1499 = vmatpush1.bf16.msra.mxu0 0
        %1500 = vmatprep.mubr.bf16.mxu0 0
        %1501 = vmatmul.mubr.bf16.gmra.mrb[0].mxu0 %v1462
        %v1502 = vpop.f32.mrb[0].mxu0
        %v1503 = vadd.f32 0.0, %v1502
        %v1504 = vpop.f32.mrb[0].mxu0
        %v1505 = vpop.f32.mrb[0].mxu0
        %v1506 = vpop.f32.mrb[0].mxu0
        %1507 = vdwg.mxu0
        %v1509 = vsel %vm1214, %v1454, 0
        %v1512 = vsel %vm1464, %v1458, 0
        %1514 = vmatprep.subr.bf16.mxu0 0
        %1515 = vmatpush1.bf16.msra.mxu0 %v1512
        %1516 = vmatprep.subr.bf16.mxu0 0
        %1517 = vmatpush1.bf16.msra.mxu0 0
        %1518 = vmatprep.subr.bf16.mxu0 0
        %1519 = vmatpush1.bf16.msra.mxu0 0
        %1520 = vmatprep.subr.bf16.mxu0 0
        %1521 = vmatpush1.bf16.msra.mxu0 0
        %1522 = vmatprep.subr.bf16.mxu0 0
        %1523 = vmatpush1.bf16.msra.mxu0 0
        %1524 = vmatprep.subr.bf16.mxu0 0
        %1525 = vmatpush1.bf16.msra.mxu0 0
        %1526 = vmatprep.subr.bf16.mxu0 0
        %1527 = vmatpush1.bf16.msra.mxu0 0
        %1528 = vmatprep.subr.bf16.mxu0 0
        %1529 = vmatpush1.bf16.msra.mxu0 0
        %1530 = vmatprep.subr.bf16.mxu0 0
        %1531 = vmatpush1.bf16.msra.mxu0 0
        %1532 = vmatprep.subr.bf16.mxu0 0
        %1533 = vmatpush1.bf16.msra.mxu0 0
        %1534 = vmatprep.subr.bf16.mxu0 0
        %1535 = vmatpush1.bf16.msra.mxu0 0
        %1536 = vmatprep.subr.bf16.mxu0 0
        %1537 = vmatpush1.bf16.msra.mxu0 0
        %1538 = vmatprep.subr.bf16.mxu0 0
        %1539 = vmatpush1.bf16.msra.mxu0 0
        %1540 = vmatprep.subr.bf16.mxu0 0
        %1541 = vmatpush1.bf16.msra.mxu0 0
        %1542 = vmatprep.subr.bf16.mxu0 0
        %1543 = vmatpush1.bf16.msra.mxu0 0
        %1544 = vmatprep.subr.bf16.mxu0 0
        %1545 = vmatpush1.bf16.msra.mxu0 0
        %1546 = vmatprep.mubr.bf16.mxu0 0
        %1547 = vmatmul.mubr.bf16.gmra.mrb[0].mxu0 %v1509
        %v1548 = vpop.f32.mrb[0].mxu0
        %v1549 = vadd.f32 0.0, %v1548
        %v1550 = vpop.f32.mrb[0].mxu0
        %v1551 = vpop.f32.mrb[0].mxu0
        %v1552 = vpop.f32.mrb[0].mxu0
        %1553 = vdwg.mxu0
        %v1555 = vsel %vm1214, %v1455, 0
        %v1558 = vsel %vm1464, %v1459, 0
        %1560 = vmatprep.subr.bf16.mxu0 0
        %1561 = vmatpush1.bf16.msra.mxu0 %v1558
        %1562 = vmatprep.subr.bf16.mxu0 0
        %1563 = vmatpush1.bf16.msra.mxu0 0
        %1564 = vmatprep.subr.bf16.mxu0 0
        %1565 = vmatpush1.bf16.msra.mxu0 0
        %1566 = vmatprep.subr.bf16.mxu0 0
        %1567 = vmatpush1.bf16.msra.mxu0 0
        %1568 = vmatprep.subr.bf16.mxu0 0
        %1569 = vmatpush1.bf16.msra.mxu0 0
        %1570 = vmatprep.subr.bf16.mxu0 0
        %1571 = vmatpush1.bf16.msra.mxu0 0
        %1572 = vmatprep.subr.bf16.mxu0 0
        %1573 = vmatpush1.bf16.msra.mxu0 0
        %1574 = vmatprep.subr.bf16.mxu0 0
        %1575 = vmatpush1.bf16.msra.mxu0 0
        %1576 = vmatprep.subr.bf16.mxu0 0
        %1577 = vmatpush1.bf16.msra.mxu0 0
        %1578 = vmatprep.subr.bf16.mxu0 0
        %1579 = vmatpush1.bf16.msra.mxu0 0
        %1580 = vmatprep.subr.bf16.mxu0 0
        %1581 = vmatpush1.bf16.msra.mxu0 0
        %1582 = vmatprep.subr.bf16.mxu0 0
        %1583 = vmatpush1.bf16.msra.mxu0 0
        %1584 = vmatprep.subr.bf16.mxu0 0
        %1585 = vmatpush1.bf16.msra.mxu0 0
        %1586 = vmatprep.subr.bf16.mxu0 0
        %1587 = vmatpush1.bf16.msra.mxu0 0
        %1588 = vmatprep.subr.bf16.mxu0 0
        %1589 = vmatpush1.bf16.msra.mxu0 0
        %1590 = vmatprep.subr.bf16.mxu0 0
        %1591 = vmatpush1.bf16.msra.mxu0 0
        %1592 = vmatprep.mubr.bf16.mxu0 0
        %1593 = vmatmul.mubr.bf16.gmra.mrb[0].mxu0 %v1555
        %v1594 = vpop.f32.mrb[0].mxu0
        %v1595 = vadd.f32 0.0, %v1594
        %v1596 = vpop.f32.mrb[0].mxu0
        %v1597 = vpop.f32.mrb[0].mxu0
        %v1598 = vpop.f32.mrb[0].mxu0
        %1599 = vdwg.mxu0
        %v1601 = vsel %vm1214, %v1456, 0
        %v1604 = vsel %vm1464, %v1460, 0
        %1606 = vmatprep.subr.bf16.mxu0 0
        %1607 = vmatpush1.bf16.msra.mxu0 %v1604
        %1608 = vmatprep.subr.bf16.mxu0 0
        %1609 = vmatpush1.bf16.msra.mxu0 0
        %1610 = vmatprep.subr.bf16.mxu0 0
        %1611 = vmatpush1.bf16.msra.mxu0 0
        %1612 = vmatprep.subr.bf16.mxu0 0
        %1613 = vmatpush1.bf16.msra.mxu0 0
        %1614 = vmatprep.subr.bf16.mxu0 0
        %1615 = vmatpush1.bf16.msra.mxu0 0
        %1616 = vmatprep.subr.bf16.mxu0 0
        %1617 = vmatpush1.bf16.msra.mxu0 0
        %1618 = vmatprep.subr.bf16.mxu0 0
        %1619 = vmatpush1.bf16.msra.mxu0 0
        %1620 = vmatprep.subr.bf16.mxu0 0
        %1621 = vmatpush1.bf16.msra.mxu0 0
        %1622 = vmatprep.subr.bf16.mxu0 0
        %1623 = vmatpush1.bf16.msra.mxu0 0
        %1624 = vmatprep.subr.bf16.mxu0 0
        %1625 = vmatpush1.bf16.msra.mxu0 0
        %1626 = vmatprep.subr.bf16.mxu0 0
        %1627 = vmatpush1.bf16.msra.mxu0 0
        %1628 = vmatprep.subr.bf16.mxu0 0
        %1629 = vmatpush1.bf16.msra.mxu0 0
        %1630 = vmatprep.subr.bf16.mxu0 0
        %1631 = vmatpush1.bf16.msra.mxu0 0
        %1632 = vmatprep.subr.bf16.mxu0 0
        %1633 = vmatpush1.bf16.msra.mxu0 0
        %1634 = vmatprep.subr.bf16.mxu0 0
        %1635 = vmatpush1.bf16.msra.mxu0 0
        %1636 = vmatprep.subr.bf16.mxu0 0
        %1637 = vmatpush1.bf16.msra.mxu0 0
        %1638 = vmatprep.mubr.bf16.mxu0 0
        %1639 = vmatmul.mubr.bf16.gmra.mrb[0].mxu0 %v1601
        %v1640 = vpop.f32.mrb[0].mxu0
        %v1641 = vadd.f32 0.0, %v1640
        %v1642 = vpop.f32.mrb[0].mxu0
        %v1643 = vpop.f32.mrb[0].mxu0
        %v1644 = vpop.f32.mrb[0].mxu0
        %1645 = vdwg.mxu0
        %v1646 = vpack.c.bf16 %v1503, %v1503
        %v1647 = vpack.c.bf16 %v1549, %v1549
        %v1648 = vpack.c.bf16 %v1595, %v1595
        %v1649 = vpack.c.bf16 %v1641, %v1641
        %v1650 = vld [vmem:[%s4] sm:$0xf]
        %v1651 = vld [vmem:[%s4 + $0x4] sm:$0xf]
        %v1652 = vld [vmem:[%s4 + $0x8] sm:$0xf]
        %v1653 = vld [vmem:[%s4 + $0xc] sm:$0xf]
        %v1655 = vsel %vm1214, %v1646, 0
        %v1658 = vsel %vm1464, %v1650, 0
        %1660 = vmatprep.subr.bf16.mxu0 0
        %1661 = vmatpush1.bf16.msra.mxu0 %v1658
        %1662 = vmatprep.subr.bf16.mxu0 0
        %1663 = vmatpush1.bf16.msra.mxu0 0
        %1664 = vmatprep.subr.bf16.mxu0 0
        %1665 = vmatpush1.bf16.msra.mxu0 0
        %1666 = vmatprep.subr.bf16.mxu0 0
        %1667 = vmatpush1.bf16.msra.mxu0 0
        %1668 = vmatprep.subr.bf16.mxu0 0
        %1669 = vmatpush1.bf16.msra.mxu0 0
        %1670 = vmatprep.subr.bf16.mxu0 0
        %1671 = vmatpush1.bf16.msra.mxu0 0
        %1672 = vmatprep.subr.bf16.mxu0 0
        %1673 = vmatpush1.bf16.msra.mxu0 0
        %1674 = vmatprep.subr.bf16.mxu0 0
        %1675 = vmatpush1.bf16.msra.mxu0 0
        %1676 = vmatprep.subr.bf16.mxu0 0
        %1677 = vmatpush1.bf16.msra.mxu0 0
        %1678 = vmatprep.subr.bf16.mxu0 0
        %1679 = vmatpush1.bf16.msra.mxu0 0
        %1680 = vmatprep.subr.bf16.mxu0 0
        %1681 = vmatpush1.bf16.msra.mxu0 0
        %1682 = vmatprep.subr.bf16.mxu0 0
        %1683 = vmatpush1.bf16.msra.mxu0 0
        %1684 = vmatprep.subr.bf16.mxu0 0
        %1685 = vmatpush1.bf16.msra.mxu0 0
        %1686 = vmatprep.subr.bf16.mxu0 0
        %1687 = vmatpush1.bf16.msra.mxu0 0
        %1688 = vmatprep.subr.bf16.mxu0 0
        %1689 = vmatpush1.bf16.msra.mxu0 0
        %1690 = vmatprep.subr.bf16.mxu0 0
        %1691 = vmatpush1.bf16.msra.mxu0 0
        %1692 = vmatprep.mubr.bf16.mxu0 0
        %1693 = vmatmul.mubr.bf16.gmra.mrb[0].mxu0 %v1655
        %v1694 = vpop.f32.mrb[0].mxu0
        %v1695 = vadd.f32 0.0, %v1694
        %v1696 = vpop.f32.mrb[0].mxu0
        %v1697 = vpop.f32.mrb[0].mxu0
        %v1698 = vpop.f32.mrb[0].mxu0
        %1699 = vdwg.mxu0
        %v1701 = vsel %vm1214, %v1647, 0
        %v1704 = vsel %vm1464, %v1651, 0
        %1706 = vmatprep.subr.bf16.mxu0 0
        %1707 = vmatpush1.bf16.msra.mxu0 %v1704
        %1708 = vmatprep.subr.bf16.mxu0 0
        %1709 = vmatpush1.bf16.msra.mxu0 0
        %1710 = vmatprep.subr.bf16.mxu0 0
        %1711 = vmatpush1.bf16.msra.mxu0 0
        %1712 = vmatprep.subr.bf16.mxu0 0
        %1713 = vmatpush1.bf16.msra.mxu0 0
        %1714 = vmatprep.subr.bf16.mxu0 0
        %1715 = vmatpush1.bf16.msra.mxu0 0
        %1716 = vmatprep.subr.bf16.mxu0 0
        %1717 = vmatpush1.bf16.msra.mxu0 0
        %1718 = vmatprep.subr.bf16.mxu0 0
        %1719 = vmatpush1.bf16.msra.mxu0 0
        %1720 = vmatprep.subr.bf16.mxu0 0
        %1721 = vmatpush1.bf16.msra.mxu0 0
        %1722 = vmatprep.subr.bf16.mxu0 0
        %1723 = vmatpush1.bf16.msra.mxu0 0
        %1724 = vmatprep.subr.bf16.mxu0 0
        %1725 = vmatpush1.bf16.msra.mxu0 0
        %1726 = vmatprep.subr.bf16.mxu0 0
        %1727 = vmatpush1.bf16.msra.mxu0 0
        %1728 = vmatprep.subr.bf16.mxu0 0
        %1729 = vmatpush1.bf16.msra.mxu0 0
        %1730 = vmatprep.subr.bf16.mxu0 0
        %1731 = vmatpush1.bf16.msra.mxu0 0
        %1732 = vmatprep.subr.bf16.mxu0 0
        %1733 = vmatpush1.bf16.msra.mxu0 0
        %1734 = vmatprep.subr.bf16.mxu0 0
        %1735 = vmatpush1.bf16.msra.mxu0 0
        %1736 = vmatprep.subr.bf16.mxu0 0
        %1737 = vmatpush1.bf16.msra.mxu0 0
        %1738 = vmatprep.mubr.bf16.mxu0 0
        %1739 = vmatmul.mubr.bf16.gmra.mrb[0].mxu0 %v1701
        %v1740 = vpop.f32.mrb[0].mxu0
        %v1741 = vadd.f32 0.0, %v1740
        %v1742 = vpop.f32.mrb[0].mxu0
        %v1743 = vpop.f32.mrb[0].mxu0
        %v1744 = vpop.f32.mrb[0].mxu0
        %1745 = vdwg.mxu0
        %v1747 = vsel %vm1214, %v1648, 0
        %v1750 = vsel %vm1464, %v1652, 0
        %1752 = vmatprep.subr.bf16.mxu0 0
        %1753 = vmatpush1.bf16.msra.mxu0 %v1750
        %1754 = vmatprep.subr.bf16.mxu0 0
        %1755 = vmatpush1.bf16.msra.mxu0 0
        %1756 = vmatprep.subr.bf16.mxu0 0
        %1757 = vmatpush1.bf16.msra.mxu0 0
        %1758 = vmatprep.subr.bf16.mxu0 0
        %1759 = vmatpush1.bf16.msra.mxu0 0
        %1760 = vmatprep.subr.bf16.mxu0 0
        %1761 = vmatpush1.bf16.msra.mxu0 0
        %1762 = vmatprep.subr.bf16.mxu0 0
        %1763 = vmatpush1.bf16.msra.mxu0 0
        %1764 = vmatprep.subr.bf16.mxu0 0
        %1765 = vmatpush1.bf16.msra.mxu0 0
        %1766 = vmatprep.subr.bf16.mxu0 0
        %1767 = vmatpush1.bf16.msra.mxu0 0
        %1768 = vmatprep.subr.bf16.mxu0 0
        %1769 = vmatpush1.bf16.msra.mxu0 0
        %1770 = vmatprep.subr.bf16.mxu0 0
        %1771 = vmatpush1.bf16.msra.mxu0 0
        %1772 = vmatprep.subr.bf16.mxu0 0
        %1773 = vmatpush1.bf16.msra.mxu0 0
        %1774 = vmatprep.subr.bf16.mxu0 0
        %1775 = vmatpush1.bf16.msra.mxu0 0
        %1776 = vmatprep.subr.bf16.mxu0 0
        %1777 = vmatpush1.bf16.msra.mxu0 0
        %1778 = vmatprep.subr.bf16.mxu0 0
        %1779 = vmatpush1.bf16.msra.mxu0 0
        %1780 = vmatprep.subr.bf16.mxu0 0
        %1781 = vmatpush1.bf16.msra.mxu0 0
        %1782 = vmatprep.subr.bf16.mxu0 0
        %1783 = vmatpush1.bf16.msra.mxu0 0
        %1784 = vmatprep.mubr.bf16.mxu0 0
        %1785 = vmatmul.mubr.bf16.gmra.mrb[0].mxu0 %v1747
        %v1786 = vpop.f32.mrb[0].mxu0
        %v1787 = vadd.f32 0.0, %v1786
        %v1788 = vpop.f32.mrb[0].mxu0
        %v1789 = vpop.f32.mrb[0].mxu0
        %v1790 = vpop.f32.mrb[0].mxu0
        %1791 = vdwg.mxu0
        %v1793 = vsel %vm1214, %v1649, 0
        %v1796 = vsel %vm1464, %v1653, 0
        %1798 = vmatprep.subr.bf16.mxu0 0
        %1799 = vmatpush1.bf16.msra.mxu0 %v1796
        %1800 = vmatprep.subr.bf16.mxu0 0
        %1801 = vmatpush1.bf16.msra.mxu0 0
        %1802 = vmatprep.subr.bf16.mxu0 0
        %1803 = vmatpush1.bf16.msra.mxu0 0
        %1804 = vmatprep.subr.bf16.mxu0 0
        %1805 = vmatpush1.bf16.msra.mxu0 0
        %1806 = vmatprep.subr.bf16.mxu0 0
        %1807 = vmatpush1.bf16.msra.mxu0 0
        %1808 = vmatprep.subr.bf16.mxu0 0
        %1809 = vmatpush1.bf16.msra.mxu0 0
        %1810 = vmatprep.subr.bf16.mxu0 0
        %1811 = vmatpush1.bf16.msra.mxu0 0
        %1812 = vmatprep.subr.bf16.mxu0 0
        %1813 = vmatpush1.bf16.msra.mxu0 0
        %1814 = vmatprep.subr.bf16.mxu0 0
        %1815 = vmatpush1.bf16.msra.mxu0 0
        %1816 = vmatprep.subr.bf16.mxu0 0
        %1817 = vmatpush1.bf16.msra.mxu0 0
        %1818 = vmatprep.subr.bf16.mxu0 0
        %1819 = vmatpush1.bf16.msra.mxu0 0
        %1820 = vmatprep.subr.bf16.mxu0 0
        %1821 = vmatpush1.bf16.msra.mxu0 0
        %1822 = vmatprep.subr.bf16.mxu0 0
        %1823 = vmatpush1.bf16.msra.mxu0 0
        %1824 = vmatprep.subr.bf16.mxu0 0
        %1825 = vmatpush1.bf16.msra.mxu0 0
        %1826 = vmatprep.subr.bf16.mxu0 0
        %1827 = vmatpush1.bf16.msra.mxu0 0
        %1828 = vmatprep.subr.bf16.mxu0 0
        %1829 = vmatpush1.bf16.msra.mxu0 0
        %1830 = vmatprep.mubr.bf16.mxu0 0
        %1831 = vmatmul.mubr.bf16.gmra.mrb[0].mxu0 %v1793
        %v1832 = vpop.f32.mrb[0].mxu0
        %v1833 = vadd.f32 0.0, %v1832
        %v1834 = vpop.f32.mrb[0].mxu0
        %v1835 = vpop.f32.mrb[0].mxu0
        %v1836 = vpop.f32.mrb[0].mxu0
        %1837 = vdwg.mxu0
        %v1838 = vsel %vm590, %v1695, 0.0
        %v1839 = vsel %vm590, %v1741, 0.0
        %v1840 = vadd.f32 %v1838, %v1839
        %v1841 = vsel %vm590, %v1787, 0.0
        %v1842 = vadd.f32 %v1840, %v1841
        %v1843 = vsel %vm590, %v1833, 0.0
        %v1844 = vadd.f32 %v1842, %v1843
        %v1845 = vld [vmem:[%s5] sm:$0x1]
        %v1847 = vlaneseq
        %v1848 = vshrl.u32 %v1847, 7
        %v1849 = vsub.s32 0, %v1848
        %v1850 = vrot.slane %v1845, %v1849
        %v1852 = vadd.f32 %v1844, %v1850
        %v1853 = vadd.f32 %v1852, %v444
        %v1854 = vsel %vm590, %v1853, 0.0
        %1855 = vadd.xlane.f32.xlu0 %v1854
        %v1856 = vpop.xlane.xlu0 %1855
        %v1857 = vrcp.pop 32.0
        %v1858 = vmul.f32 %v1856, %v1857
        %v1859 = vsub.f32 %v1853, %v1858
        %v1860 = vmul.f32 %v1859, %v1859
        %v1861 = vsel %vm590, %v1860, 0.0
        %1862 = vadd.xlane.f32.xlu0 %v1861
        %v1863 = vpop.xlane.xlu0 %1862
        %v1864 = vmul.f32 %v1863, %v1857
        %v1865 = vadd.f32 %v1864, 1e-05
        %v1866 = vrsqrt.pop %v1865
        %v1867 = vmul.f32 %v1859, %v1866
        %v1868 = vld [vmem:[%s6] sm:$0x1]
        %v1870 = vlaneseq
        %v1871 = vshrl.u32 %v1870, 7
        %v1872 = vsub.s32 0, %v1871
        %v1873 = vrot.slane %v1868, %v1872
        %v1875 = vmul.f32 %v1867, %v1873
        %v1876 = vld [vmem:[%s7] sm:$0x1]
        %v1878 = vlaneseq
        %v1879 = vshrl.u32 %v1878, 7
        %v1880 = vsub.s32 0, %v1879
        %v1881 = vrot.slane %v1876, %v1880
        %v1883 = vadd.f32 %v1875, %v1881
        %v1884 = vpack.c.bf16 %v1883, %v1883
        %v1885 = vld [vmem:[%s8] sm:$0xf]
        %v1886 = vld [vmem:[%s8 + $0x4] sm:$0xf]
        %v1887 = vld [vmem:[%s8 + $0x8] sm:$0xf]
        %v1888 = vld [vmem:[%s8 + $0xc] sm:$0xf]
        %v1889 = vld [vmem:[%s9] sm:$0x1]
        %v1891 = vlaneseq
        %v1892 = vshrl.u32 %v1891, 7
        %v1893 = vsub.s32 0, %v1892
        %v1894 = vrot.slane %v1889, %v1893
        %v1900 = vunpack.c.l.b16 %v1885
        %v1901 = vunpack.c.l.b16 %v1886
        %v1902 = vunpack.c.l.b16 %v1887
        %v1903 = vunpack.c.l.b16 %v1888
        %v1904 = vpack.c.b16 %v1901, %v1900
        %v1905 = vpack.c.b16 %v1903, %v1902
        %v1909 = vsel %vm590, %v1884, 0
        %1911 = vmatprep.subr.bf16.mxu0 0
        %1912 = vmatpush1.bf16.msra.mxu0 %v1904
        %1913 = vmatprep.subr.bf16.mxu0 0
        %1914 = vmatpush1.bf16.msra.mxu0 %v1905
        %1915 = vmatprep.subr.bf16.mxu0 0
        %1916 = vmatpush1.bf16.msra.mxu0 0
        %1917 = vmatprep.subr.bf16.mxu0 0
        %1918 = vmatpush1.bf16.msra.mxu0 0
        %1919 = vmatprep.subr.bf16.mxu0 0
        %1920 = vmatpush1.bf16.msra.mxu0 0
        %1921 = vmatprep.subr.bf16.mxu0 0
        %1922 = vmatpush1.bf16.msra.mxu0 0
        %1923 = vmatprep.subr.bf16.mxu0 0
        %1924 = vmatpush1.bf16.msra.mxu0 0
        %1925 = vmatprep.subr.bf16.mxu0 0
        %1926 = vmatpush1.bf16.msra.mxu0 0
        %1927 = vmatprep.subr.bf16.mxu0 0
        %1928 = vmatpush1.bf16.msra.mxu0 0
        %1929 = vmatprep.subr.bf16.mxu0 0
        %1930 = vmatpush1.bf16.msra.mxu0 0
        %1931 = vmatprep.subr.bf16.mxu0 0
        %1932 = vmatpush1.bf16.msra.mxu0 0
        %1933 = vmatprep.subr.bf16.mxu0 0
        %1934 = vmatpush1.bf16.msra.mxu0 0
        %1935 = vmatprep.subr.bf16.mxu0 0
        %1936 = vmatpush1.bf16.msra.mxu0 0
        %1937 = vmatprep.subr.bf16.mxu0 0
        %1938 = vmatpush1.bf16.msra.mxu0 0
        %1939 = vmatprep.subr.bf16.mxu0 0
        %1940 = vmatpush1.bf16.msra.mxu0 0
        %1941 = vmatprep.subr.bf16.mxu0 0
        %1942 = vmatpush1.bf16.msra.mxu0 0
        %1943 = vmatprep.mubr.bf16.mxu0 0
        %1944 = vmatmul.mubr.bf16.gmra.mrb[0].mxu0 %v1909
        %v1945 = vpop.f32.mrb[0].mxu0
        %v1946 = vadd.f32 %v1894, %v1945
        %v1947 = vpop.f32.mrb[0].mxu0
        %v1948 = vpop.f32.mrb[0].mxu0
        %v1949 = vpop.f32.mrb[0].mxu0
        %1950 = vdwg.mxu0
        %v1951 = vmax.f32 %v1946, 0.0
        %v1952 = vpack.c.bf16 %v1951, %v1951
        %v1953 = vld [vmem:[%s10] sm:$0xf]
        %v1954 = vld [vmem:[%s10 + $0x4] sm:$0xf]
        %v1955 = vld [vmem:[%s10 + $0x8] sm:$0xf]
        %v1956 = vld [vmem:[%s10 + $0xc] sm:$0xf]
        %v1957 = vld [vmem:[%s10 + $0x10] sm:$0xf]
        %v1958 = vld [vmem:[%s10 + $0x14] sm:$0xf]
        %v1959 = vld [vmem:[%s10 + $0x18] sm:$0xf]
        %v1960 = vld [vmem:[%s10 + $0x1c] sm:$0xf]
        %v1961 = vld [vmem:[%s11] sm:$0x1]
        %v1963 = vlaneseq
        %v1964 = vshrl.u32 %v1963, 7
        %v1965 = vsub.s32 0, %v1964
        %v1966 = vrot.slane %v1961, %v1965
        %v1976 = vunpack.c.l.b16 %v1953
        %v1977 = vunpack.c.l.b16 %v1954
        %v1978 = vunpack.c.l.b16 %v1955
        %v1979 = vunpack.c.l.b16 %v1956
        %v1980 = vunpack.c.l.b16 %v1957
        %v1981 = vunpack.c.l.b16 %v1958
        %v1982 = vunpack.c.l.b16 %v1959
        %v1983 = vunpack.c.l.b16 %v1960
        %v1984 = vpack.c.b16 %v1977, %v1976
        %v1985 = vpack.c.b16 %v1979, %v1978
        %v1986 = vpack.c.b16 %v1981, %v1980
        %v1987 = vpack.c.b16 %v1983, %v1982
        %vm1992 = vcmask 523264
        %v1994 = vsel %vm1992, %v1952, 0
        %1996 = vmatprep.subr.bf16.mxu0 0
        %1997 = vmatpush1.bf16.msra.mxu0 %v1984
        %1998 = vmatprep.subr.bf16.mxu0 0
        %1999 = vmatpush1.bf16.msra.mxu0 %v1985
        %2000 = vmatprep.subr.bf16.mxu0 0
        %2001 = vmatpush1.bf16.msra.mxu0 %v1986
        %2002 = vmatprep.subr.bf16.mxu0 0
        %2003 = vmatpush1.bf16.msra.mxu0 %v1987
        %2004 = vmatprep.subr.bf16.mxu0 0
        %2005 = vmatpush1.bf16.msra.mxu0 0
        %2006 = vmatprep.subr.bf16.mxu0 0
        %2007 = vmatpush1.bf16.msra.mxu0 0
        %2008 = vmatprep.subr.bf16.mxu0 0
        %2009 = vmatpush1.bf16.msra.mxu0 0
        %2010 = vmatprep.subr.bf16.mxu0 0
        %2011 = vmatpush1.bf16.msra.mxu0 0
        %2012 = vmatprep.subr.bf16.mxu0 0
        %2013 = vmatpush1.bf16.msra.mxu0 0
        %2014 = vmatprep.subr.bf16.mxu0 0
        %2015 = vmatpush1.bf16.msra.mxu0 0
        %2016 = vmatprep.subr.bf16.mxu0 0
        %2017 = vmatpush1.bf16.msra.mxu0 0
        %2018 = vmatprep.subr.bf16.mxu0 0
        %2019 = vmatpush1.bf16.msra.mxu0 0
        %2020 = vmatprep.subr.bf16.mxu0 0
        %2021 = vmatpush1.bf16.msra.mxu0 0
        %2022 = vmatprep.subr.bf16.mxu0 0
        %2023 = vmatpush1.bf16.msra.mxu0 0
        %2024 = vmatprep.subr.bf16.mxu0 0
        %2025 = vmatpush1.bf16.msra.mxu0 0
        %2026 = vmatprep.subr.bf16.mxu0 0
        %2027 = vmatpush1.bf16.msra.mxu0 0
        %2028 = vmatprep.mubr.bf16.mxu0 0
        %2029 = vmatmul.mubr.bf16.gmra.mrb[0].mxu0 %v1994
        %v2030 = vpop.f32.mrb[0].mxu0
        %v2031 = vadd.f32 %v1966, %v2030
        %v2032 = vpop.f32.mrb[0].mxu0
        %v2033 = vpop.f32.mrb[0].mxu0
        %v2034 = vpop.f32.mrb[0].mxu0
        %2035 = vdwg.mxu0
        %v2036 = vadd.f32 %v2031, %v1883
        %v2037 = vsel %vm590, %v2036, 0.0
        %2038 = vadd.xlane.f32.xlu0 %v2037
        %v2039 = vpop.xlane.xlu0 %2038
        %v2040 = vmul.f32 %v2039, %v1857
        %v2041 = vsub.f32 %v2036, %v2040
        %v2042 = vmul.f32 %v2041, %v2041
        %v2043 = vsel %vm590, %v2042, 0.0
        %2044 = vadd.xlane.f32.xlu0 %v2043
        %v2045 = vpop.xlane.xlu0 %2044
        %v2046 = vmul.f32 %v2045, %v1857
        %v2047 = vadd.f32 %v2046, 1e-05
        %v2048 = vrsqrt.pop %v2047
        %v2049 = vmul.f32 %v2041, %v2048
        %v2050 = vld [vmem:[%s12] sm:$0x1]
        %v2052 = vlaneseq
        %v2053 = vshrl.u32 %v2052, 7
        %v2054 = vsub.s32 0, %v2053
        %v2055 = vrot.slane %v2050, %v2054
        %v2057 = vmul.f32 %v2049, %v2055
        %v2058 = vld [vmem:[%s13] sm:$0x1]
        %v2060 = vlaneseq
        %v2061 = vshrl.u32 %v2060, 7
        %v2062 = vsub.s32 0, %v2061
        %v2063 = vrot.slane %v2058, %v2062
        %v2065 = vadd.f32 %v2057, %v2063
        %2066 = vst.msk [vmem:[%s438] sm:$0xff] %vm590, %v2065
        %s2067 = sand.u32 %s320, 1
        %s2068 = scalar_lea.sflag [#allocation5], %s2067
        %s2069 = sand.u32 %s320, 1
        %s2070 = smul.addr %s2069, 8
        %s2071 = scalar_lea.vmem [#allocation4], %s2070
        // Predicated region
        $region73: #{tpu_custom_call.1} parent=71 // pred_check
          %p2072 = pneg %p330
        $region74: #{tpu_custom_call.1} parent=71 // pred_check_branch
          %2074 = sbr.rel (%p2072) target = $region76
        $region75: #{tpu_custom_call.1} parent=71 // pred_region
          %s2076 = ssub.s32 128, 128
          %2077 = vsyncadd %s2068, %s2076
          %s2078 = smul.addr %s34, 128
          %s2079 = scalar_lea.hbm %s14, %s2078
          %s2081 = sshll.u32 %s2071, 4
          %s2082 = int_to_ptr.vmem [resolvable:$true] %s2081
          %2084 = dma.vmem_to_hbm [thread:$0]  %s2082, 128, %s2079, %s2068
        $region76: #{tpu_custom_call.1} parent=71 // pred_fallthru
          _
      $region72: #{tpu_custom_call.1} parent=5 // pred_fallthru
        _
      %p2085 = scmp.le.s32.totalorder 2, %s29
      // Predicated region
      $region77: #{tpu_custom_call.1} parent=5 // pred_check
        %p2086 = pneg %p2085
      $region78: #{tpu_custom_call.1} parent=5 // pred_check_branch
        %2088 = sbr.rel (%p2086) target = $region80
      $region79: #{tpu_custom_call.1} parent=5 // pred_region
        %s2089 = ssub.s32 %s29, 2
        // Predicated region
        $region81: #{tpu_custom_call.1} parent=79 // pred_check
          %p2090 = pneg %p336
        $region82: #{tpu_custom_call.1} parent=79 // pred_check_branch
          %2092 = sbr.rel (%p2090) target = $region84
        $region83: #{tpu_custom_call.1} parent=79 // pred_region
          %s2093 = sand.u32 %s321, 1
          %s2094 = scalar_lea.sflag [#allocation5], %s2093
          %s2095 = sand.u32 %s321, 1
          %s2096 = smul.addr %s2095, 8
          %s2097 = scalar_lea.vmem [#allocation4], %s2096
          %2098 = dma.done %s2094, 128
        $region84: #{tpu_custom_call.1} parent=79 // pred_fallthru
          _
      $region80: #{tpu_custom_call.1} parent=5 // pred_fallthru
        _
    $region6: #{tpu_custom_call.1} parent=1 // loop_footer
      %s33 = sadd.s32 1, %s29
    $region7: #{tpu_custom_call.1} parent=1 // loop_footer_branch
      %28 = sbr.rel target = $region3
    $region8: #{tpu_custom_call.1} parent=1 // loop_exit
      _
    %2099 = vsyncpa [#allocation5], 1
    %s2100 = scalar_lea.sflag [#allocation5], 1
    %2101 = vsyncpa %s2100, 1

</llo_original>
